<compile_context>
chip_gen: v7x
topology: tpu7x:2x2x1
jax: 0.10.0
libtpu: 0.0.40
codegen_flags: <defaults>
</compile_context>

<pallas_src>
import math

import jax
import jax.numpy as jnp
from jax.experimental import pallas as pl
from jax.experimental.pallas import tpu as pltpu

_INV_SQRT2 = 1.0 / math.sqrt(2.0)
_HAS_BUFFERED = hasattr(pl, "Buffered")


def _mlp_kernel(x_ref, w1_ref, b1_ref, w2_ref, b2_ref, o_ref, acc_ref):
    # x_ref:  (tm, Cin)       w1_ref: (Cin, th)    b1_ref: (1, th)
    # w2_ref: (th, Cout)      b2_ref: (1, Cout)    o_ref:  (tm, Cout)
    # acc_ref: (tm, Cout) f32 scratch, lives across the hidden (k) grid axis.
    kh = pl.program_id(1)

    @pl.when(kh == 0)
    def _init():
        acc_ref[...] = jnp.zeros_like(acc_ref)

    # fc1 on this hidden-dim slice: native-dtype operands, f32 accumulation.
    h = jnp.dot(x_ref[...], w1_ref[...], preferred_element_type=jnp.float32)
    h = h + b1_ref[...].astype(jnp.float32)

    # exact (erf) GELU in f32 -- matches torch.nn.GELU() default.
    h = jnp.float32(0.5) * h * (jnp.float32(1.0)
                                + jax.lax.erf(h * jnp.float32(_INV_SQRT2)))

    # fc2 partial product for this hidden slice; cast h back to the weight
    # dtype so the MXU runs at native (e.g. bf16) rate, accumulate in f32.
    acc_ref[...] += jnp.dot(h.astype(w2_ref.dtype), w2_ref[...],
                            preferred_element_type=jnp.float32)

    @pl.when(kh == pl.num_programs(1) - 1)
    def _finalize():
        o_ref[...] = (acc_ref[...]
                      + b2_ref[...].astype(jnp.float32)).astype(o_ref.dtype)


def _round_up(v, mult):
    return ((v + mult - 1) // mult) * mult


def _pick_hidden_tile(chid):
    """Hidden-dim tile: full if small, else largest 128-multiple divisor."""
    if chid <= 1024:
        return chid
    for t in (1024, 512, 256, 128):
        if chid % t == 0:
            return t
    return chid  # fallback: keep full hidden resident


def _bspec(shape, index_map, single_buffer=False):
    # Constant-index blocks don't need double buffering.
    if single_buffer and _HAS_BUFFERED:
        return pl.BlockSpec(shape, index_map, pipeline_mode=pl.Buffered(1))
    return pl.BlockSpec(shape, index_map)


def mlp_pallas(x, w1, b1, w2, b2, *, tm=512, th=None):
    """x: (..., Cin) -> (..., Cout).  Weights stored as (in, out)."""
    orig_shape = x.shape
    cin = orig_shape[-1]
    chid, cout = w1.shape[1], w2.shape[1]

    x2d = x.reshape(-1, cin)
    m = x2d.shape[0]

    th = th if th is not None else _pick_hidden_tile(chid)
    assert chid % th == 0, "hidden tile must divide hidden_features"

    # Row tile: large (MXU M fill, amortize per-step overhead), but no larger
    # than the (sublane-aligned) token count.
    tm = min(tm, _round_up(m, 16))

    # Keep the double-buffered working set under the smallest default scoped
    # VMEM limit (v5e: 16 MiB) so the kernel runs everywhere without flag
    # tweaks.  Shrink tm if needed.
    xb, wb = x.dtype.itemsize, w1.dtype.itemsize

    def _vmem_est(tm_):
        return (2 * tm_ * cin * xb + 2 * tm_ * cout * xb          # x/out tiles
                + 2 * (cin * th + th + th * cout + cout) * wb     # weights/bias
                + tm_ * cout * 4)                                 # f32 acc

    while tm > 128 and _vmem_est(tm) > 12 * 1024 * 1024:
        tm = max(128, _round_up(tm // 2, 16))

    gm, gh = pl.cdiv(m, tm), chid // th

    b1_2d = b1.reshape(1, chid)
    b2_2d = b2.reshape(1, cout)

    # NOTE: for deployments with Cout < 128 (e.g. 96-dim stages) padding the
    # channel dims to 128 in the wrapper gives lane-dense stores; not done here
    # to keep I/O shapes identical to the PyTorch module.

    def _build(use_single_buffer):
        w_const = use_single_buffer and gh == 1   # weights constant over grid
        in_specs = [
            pl.BlockSpec((tm, cin), lambda i, k: (i, 0)),          # x row tile
            _bspec((cin, th), lambda i, k: (0, k), w_const),       # W1 slice
            _bspec((1, th), lambda i, k: (0, k), w_const),         # b1 slice
            _bspec((th, cout), lambda i, k: (k, 0), w_const),      # W2 slice
            _bspec((1, cout), lambda i, k: (0, 0), use_single_buffer),  # b2
        ]
        return pl.pallas_call(
            _mlp_kernel,
            out_shape=jax.ShapeDtypeStruct((m, cout), x.dtype),
            grid=(gm, gh),
            in_specs=in_specs,
            out_specs=pl.BlockSpec((tm, cout), lambda i, k: (i, 0)),
            scratch_shapes=[pltpu.VMEM((tm, cout), jnp.float32)],
            compiler_params=pltpu.CompilerParams(
                dimension_semantics=("parallel", "arbitrary")),
        )

    try:
        out2d = _build(True)(x2d, w1, b1_2d, w2, b2_2d)
    except Exception:
        # Fallback for jax versions where pl.Buffered(1) is not accepted.
        out2d = _build(False)(x2d, w1, b1_2d, w2, b2_2d)

    return out2d.reshape(*orig_shape[:-1], cout)


def init_mlp_params(key, in_features, hidden_features, out_features,
                    dtype=jnp.float32):
    """Deterministic init mimicking nn.Linear (uniform +-1/sqrt(fan_in)).

    Weights are stored transposed vs. PyTorch: (in, out) instead of (out, in).
    """
    k1, k2, k3, k4 = jax.random.split(key, 4)
    bound1 = 1.0 / math.sqrt(in_features)
    bound2 = 1.0 / math.sqrt(hidden_features)
    w1 = jax.random.uniform(k1, (in_features, hidden_features), dtype,
                            minval=-bound1, maxval=bound1)
    b1 = jax.random.uniform(k2, (hidden_features,), dtype,
                            minval=-bound1, maxval=bound1)
    w2 = jax.random.uniform(k3, (hidden_features, out_features), dtype,
                            minval=-bound2, maxval=bound2)
    b2 = jax.random.uniform(k4, (out_features,), dtype,
                            minval=-bound2, maxval=bound2)
    return w1, b1, w2, b2


if __name__ == "__main__":
    key = jax.random.PRNGKey(0)
    kx1, kp1, kx2, kp2 = jax.random.split(key, 4)

    # ---- test 1: small shapes, single tile path ---------------------------
    B, H, W, Cin = 2, 8, 8, 16
    hidden, Cout = 32, 16
    x = jax.random.normal(kx1, (B, H, W, Cin), dtype=jnp.float32)
    w1, b1, w2, b2 = init_mlp_params(kp1, Cin, hidden, Cout)

    out = mlp_pallas(x, w1, b1, w2, b2)
    out = jax.block_until_ready(out)

    ref = jax.nn.gelu(x @ w1 + b1, approximate=False) @ w2 + b2
    assert out.shape == (B, H, W, Cout)
    assert jnp.allclose(out, ref, atol=1e-5, rtol=1e-5)

    # ---- test 2: multiple row tiles (ragged last block) + hidden-dim
    # reduction across two tiles with the f32 accumulator --------------------
    B2, H2, W2, Cin2 = 2, 12, 12, 32      # m = 288 -> 3 row tiles of 128
    hidden2, Cout2 = 256, 32              # th = 128 -> 2 hidden tiles
    x2 = jax.random.normal(kx2, (B2, H2, W2, Cin2), dtype=jnp.float32)
    p2 = init_mlp_params(kp2, Cin2, hidden2, Cout2)

    out2 = mlp_pallas(x2, *p2, tm=128, th=128)
    out2 = jax.block_until_ready(out2)

    ref2 = jax.nn.gelu(x2 @ p2[0] + p2[1], approximate=False) @ p2[2] + p2[3]
    assert out2.shape == (B2, H2, W2, Cout2)
    assert jnp.allclose(out2, ref2, atol=1e-4, rtol=1e-4)

    print("KERNEL_OK")
</pallas_src>

<mosaic_0001>
module attributes {stable_mosaic.version = 11 : i64} {
  func.func @_mlp_kernel(%arg0: i32, %arg1: i32, %arg2: memref<128x16xf32, #tpu.memory_space<vmem>>, %arg3: memref<16x32xf32, #tpu.memory_space<vmem>>, %arg4: memref<1x32xf32, #tpu.memory_space<vmem>>, %arg5: memref<32x16xf32, #tpu.memory_space<vmem>>, %arg6: memref<1x16xf32, #tpu.memory_space<vmem>>, %arg7: memref<128x16xf32, #tpu.memory_space<vmem>>, %arg8: memref<128x16xf32, #tpu.memory_space<vmem>>) attributes {dimension_semantics = [#tpu.dimension_semantics<parallel>, #tpu.dimension_semantics<arbitrary>], iteration_bounds = array<i64: 1, 1>, scalar_prefetch = 0 : i64, scratch_operands = 1 : i64, tpu.core_type = #tpu.core_type<tc>, window_params = [{transform_indices = @transform_0, window_bounds = array<i64: 128, 16>}, {pipeline_mode = #tpu.pipeline_mode<synchronous>, transform_indices = @transform_1, window_bounds = array<i64: 16, 32>}, {pipeline_mode = #tpu.pipeline_mode<synchronous>, transform_indices = @transform_2, window_bounds = array<i64: 1, 32>}, {pipeline_mode = #tpu.pipeline_mode<synchronous>, transform_indices = @transform_3, window_bounds = array<i64: 32, 16>}, {pipeline_mode = #tpu.pipeline_mode<synchronous>, transform_indices = @transform_4, window_bounds = array<i64: 1, 16>}, {transform_indices = @transform_5, window_bounds = array<i64: 128, 16>}]} {
    %c0_i32 = arith.constant 0 : i32
    %0 = arith.cmpi eq, %arg1, %c0_i32 : i32
    %1 = arith.extui %0 : i1 to i32
    %c0_i32_0 = arith.constant 0 : i32
    %2 = arith.cmpi ne, %1, %c0_i32_0 : i32
    scf.if %2 {
      %cst_18 = arith.constant 0.000000e+00 : f32
      %25 = vector.broadcast %cst_18 : f32 to vector<128x16xf32>
      %c0_19 = arith.constant 0 : index
      %c0_20 = arith.constant 0 : index
      %26 = vector.load %arg8[%c0_19, %c0_20] : memref<128x16xf32, #tpu.memory_space<vmem>>, vector<128x16xf32>
      tpu.vector_store %arg8[%c0_19, %c0_20], %25 {strides = array<i32>} : memref<128x16xf32, #tpu.memory_space<vmem>>, vector<128x16xf32>,
    } else {
    }
    %c0 = arith.constant 0 : index
    %c0_1 = arith.constant 0 : index
    %3 = vector.load %arg2[%c0, %c0_1] : memref<128x16xf32, #tpu.memory_space<vmem>>, vector<128x16xf32>
    %c0_2 = arith.constant 0 : index
    %c0_3 = arith.constant 0 : index
    %4 = vector.load %arg3[%c0_2, %c0_3] : memref<16x32xf32, #tpu.memory_space<vmem>>, vector<16x32xf32>
    %cst = arith.constant dense<0.000000e+00> : vector<128x32xf32>
    %5 = tpu.matmul %3, %4, %cst {dimension_numbers = #tpu.dot_dimension_numbers<[1], [0], [0], [1], [0, 0, 1, 1], [], []>} : vector<128x16xf32>, vector<16x32xf32>, vector<128x32xf32> -> vector<128x32xf32>
    %c0_4 = arith.constant 0 : index
    %c0_5 = arith.constant 0 : index
    %6 = vector.load %arg4[%c0_4, %c0_5] : memref<1x32xf32, #tpu.memory_space<vmem>>, vector<1x32xf32>
    %7 = vector.broadcast %6 : vector<1x32xf32> to vector<128x32xf32>
    %8 = arith.addf %5, %7 : vector<128x32xf32>
    %cst_6 = arith.constant 5.000000e-01 : f32
    %9 = vector.broadcast %cst_6 : f32 to vector<128x32xf32>
    %10 = arith.mulf %9, %8 : vector<128x32xf32>
    %cst_7 = arith.constant 0.707106769 : f32
    %11 = vector.broadcast %cst_7 : f32 to vector<128x32xf32>
    %12 = arith.mulf %8, %11 : vector<128x32xf32>
    %13 = math.erf %12 : vector<128x32xf32>
    %cst_8 = arith.constant 1.000000e+00 : f32
    %14 = vector.broadcast %cst_8 : f32 to vector<128x32xf32>
    %15 = arith.addf %14, %13 : vector<128x32xf32>
    %16 = arith.mulf %10, %15 : vector<128x32xf32>
    %c0_9 = arith.constant 0 : index
    %c0_10 = arith.constant 0 : index
    %17 = vector.load %arg8[%c0_9, %c0_10] : memref<128x16xf32, #tpu.memory_space<vmem>>, vector<128x16xf32>
    %c0_11 = arith.constant 0 : index
    %c0_12 = arith.constant 0 : index
    %18 = vector.load %arg5[%c0_11, %c0_12] : memref<32x16xf32, #tpu.memory_space<vmem>>, vector<32x16xf32>
    %cst_13 = arith.constant dense<0.000000e+00> : vector<128x16xf32>
    %19 = tpu.matmul %16, %18, %cst_13 {dimension_numbers = #tpu.dot_dimension_numbers<[1], [0], [0], [1], [0, 0, 1, 1], [], []>} : vector<128x32xf32>, vector<32x16xf32>, vector<128x16xf32> -> vector<128x16xf32>
    %20 = arith.addf %17, %19 : vector<128x16xf32>
    %c0_14 = arith.constant 0 : index
    %c0_15 = arith.constant 0 : index
    %21 = vector.load %arg8[%c0_14, %c0_15] : memref<128x16xf32, #tpu.memory_space<vmem>>, vector<128x16xf32>
    tpu.vector_store %arg8[%c0_14, %c0_15], %20 {strides = array<i32>} : memref<128x16xf32, #tpu.memory_space<vmem>>, vector<128x16xf32>,
    %c0_i32_16 = arith.constant 0 : i32
    %22 = arith.cmpi eq, %arg1, %c0_i32_16 : i32
    %23 = arith.extui %22 : i1 to i32
    %c0_i32_17 = arith.constant 0 : i32
    %24 = arith.cmpi ne, %23, %c0_i32_17 : i32
    scf.if %24 {
      %c0_18 = arith.constant 0 : index
      %c0_19 = arith.constant 0 : index
      %25 = vector.load %arg8[%c0_18, %c0_19] : memref<128x16xf32, #tpu.memory_space<vmem>>, vector<128x16xf32>
      %c0_20 = arith.constant 0 : index
      %c0_21 = arith.constant 0 : index
      %26 = vector.load %arg6[%c0_20, %c0_21] : memref<1x16xf32, #tpu.memory_space<vmem>>, vector<1x16xf32>
      %27 = vector.broadcast %26 : vector<1x16xf32> to vector<128x16xf32>
      %28 = arith.addf %25, %27 : vector<128x16xf32>
      %c0_22 = arith.constant 0 : index
      %c0_23 = arith.constant 0 : index
      %29 = vector.load %arg7[%c0_22, %c0_23] : memref<128x16xf32, #tpu.memory_space<vmem>>, vector<128x16xf32>
      tpu.vector_store %arg7[%c0_22, %c0_23], %28 {strides = array<i32>} : memref<128x16xf32, #tpu.memory_space<vmem>>, vector<128x16xf32>,
    } else {
    }
    return
  }
  func.func @transform_0(%arg0: i32, %arg1: i32) -> (i32, i32) {
    %c0_i32 = arith.constant 0 : i32
    %c0_i32_0 = arith.constant 0 : i32
    return %arg0, %c0_i32 : i32, i32
  }
  func.func @transform_1(%arg0: i32, %arg1: i32) -> (i32, i32) {
    %c0_i32 = arith.constant 0 : i32
    %c0_i32_0 = arith.constant 0 : i32
    return %c0_i32, %arg1 : i32, i32
  }
  func.func @transform_2(%arg0: i32, %arg1: i32) -> (i32, i32) {
    %c0_i32 = arith.constant 0 : i32
    %c0_i32_0 = arith.constant 0 : i32
    return %c0_i32, %arg1 : i32, i32
  }
  func.func @transform_3(%arg0: i32, %arg1: i32) -> (i32, i32) {
    %c0_i32 = arith.constant 0 : i32
    %c0_i32_0 = arith.constant 0 : i32
    return %arg1, %c0_i32 : i32, i32
  }
  func.func @transform_4(%arg0: i32, %arg1: i32) -> (i32, i32) {
    %c0_i32 = arith.constant 0 : i32
    %c0_i32_0 = arith.constant 0 : i32
    %c0_i32_1 = arith.constant 0 : i32
    return %c0_i32, %c0_i32_0 : i32, i32
  }
  func.func @transform_5(%arg0: i32, %arg1: i32) -> (i32, i32) {
    %c0_i32 = arith.constant 0 : i32
    %c0_i32_0 = arith.constant 0 : i32
    return %arg0, %c0_i32 : i32, i32
  }
}

module attributes {stable_mosaic.version = 11 : i64} {
  func.func @_mlp_kernel(%arg0: i32, %arg1: i32, %arg2: memref<128x16xf32, #tpu.memory_space<vmem>>, %arg3: memref<16x32xf32, #tpu.memory_space<vmem>>, %arg4: memref<1x32xf32, #tpu.memory_space<vmem>>, %arg5: memref<32x16xf32, #tpu.memory_space<vmem>>, %arg6: memref<1x16xf32, #tpu.memory_space<vmem>>, %arg7: memref<128x16xf32, #tpu.memory_space<vmem>>, %arg8: memref<128x16xf32, #tpu.memory_space<vmem>>) attributes {dimension_semantics = [#tpu.dimension_semantics<parallel>, #tpu.dimension_semantics<arbitrary>], iteration_bounds = array<i64: 1, 1>, scalar_prefetch = 0 : i64, scratch_operands = 1 : i64, tpu.core_type = #tpu.core_type<tc>, window_params = [{transform_indices = @transform_0, window_bounds = array<i64: 128, 16>}, {transform_indices = @transform_1, window_bounds = array<i64: 16, 32>}, {transform_indices = @transform_2, window_bounds = array<i64: 1, 32>}, {transform_indices = @transform_3, window_bounds = array<i64: 32, 16>}, {pipeline_mode = #tpu.pipeline_mode<synchronous>, transform_indices = @transform_4, window_bounds = array<i64: 1, 16>}, {transform_indices = @transform_5, window_bounds = array<i64: 128, 16>}]} {
    %c0_i32 = arith.constant 0 : i32
    %0 = arith.cmpi eq, %arg1, %c0_i32 : i32
    %1 = arith.extui %0 : i1 to i32
    %c0_i32_0 = arith.constant 0 : i32
    %2 = arith.cmpi ne, %1, %c0_i32_0 : i32
    scf.if %2 {
      %cst_18 = arith.constant 0.000000e+00 : f32
      %25 = vector.broadcast %cst_18 : f32 to vector<128x16xf32>
      %c0_19 = arith.constant 0 : index
      %c0_20 = arith.constant 0 : index
      %26 = vector.load %arg8[%c0_19, %c0_20] : memref<128x16xf32, #tpu.memory_space<vmem>>, vector<128x16xf32>
      tpu.vector_store %arg8[%c0_19, %c0_20], %25 {strides = array<i32>} : memref<128x16xf32, #tpu.memory_space<vmem>>, vector<128x16xf32>,
    } else {
    }
    %c0 = arith.constant 0 : index
    %c0_1 = arith.constant 0 : index
    %3 = vector.load %arg2[%c0, %c0_1] : memref<128x16xf32, #tpu.memory_space<vmem>>, vector<128x16xf32>
    %c0_2 = arith.constant 0 : index
    %c0_3 = arith.constant 0 : index
    %4 = vector.load %arg3[%c0_2, %c0_3] : memref<16x32xf32, #tpu.memory_space<vmem>>, vector<16x32xf32>
    %cst = arith.constant dense<0.000000e+00> : vector<128x32xf32>
    %5 = tpu.matmul %3, %4, %cst {dimension_numbers = #tpu.dot_dimension_numbers<[1], [0], [0], [1], [0, 0, 1, 1], [], []>} : vector<128x16xf32>, vector<16x32xf32>, vector<128x32xf32> -> vector<128x32xf32>
    %c0_4 = arith.constant 0 : index
    %c0_5 = arith.constant 0 : index
    %6 = vector.load %arg4[%c0_4, %c0_5] : memref<1x32xf32, #tpu.memory_space<vmem>>, vector<1x32xf32>
    %7 = vector.broadcast %6 : vector<1x32xf32> to vector<128x32xf32>
    %8 = arith.addf %5, %7 : vector<128x32xf32>
    %cst_6 = arith.constant 5.000000e-01 : f32
    %9 = vector.broadcast %cst_6 : f32 to vector<128x32xf32>
    %10 = arith.mulf %9, %8 : vector<128x32xf32>
    %cst_7 = arith.constant 0.707106769 : f32
    %11 = vector.broadcast %cst_7 : f32 to vector<128x32xf32>
    %12 = arith.mulf %8, %11 : vector<128x32xf32>
    %13 = math.erf %12 : vector<128x32xf32>
    %cst_8 = arith.constant 1.000000e+00 : f32
    %14 = vector.broadcast %cst_8 : f32 to vector<128x32xf32>
    %15 = arith.addf %14, %13 : vector<128x32xf32>
    %16 = arith.mulf %10, %15 : vector<128x32xf32>
    %c0_9 = arith.constant 0 : index
    %c0_10 = arith.constant 0 : index
    %17 = vector.load %arg8[%c0_9, %c0_10] : memref<128x16xf32, #tpu.memory_space<vmem>>, vector<128x16xf32>
    %c0_11 = arith.constant 0 : index
    %c0_12 = arith.constant 0 : index
    %18 = vector.load %arg5[%c0_11, %c0_12] : memref<32x16xf32, #tpu.memory_space<vmem>>, vector<32x16xf32>
    %cst_13 = arith.constant dense<0.000000e+00> : vector<128x16xf32>
    %19 = tpu.matmul %16, %18, %cst_13 {dimension_numbers = #tpu.dot_dimension_numbers<[1], [0], [0], [1], [0, 0, 1, 1], [], []>} : vector<128x32xf32>, vector<32x16xf32>, vector<128x16xf32> -> vector<128x16xf32>
    %20 = arith.addf %17, %19 : vector<128x16xf32>
    %c0_14 = arith.constant 0 : index
    %c0_15 = arith.constant 0 : index
    %21 = vector.load %arg8[%c0_14, %c0_15] : memref<128x16xf32, #tpu.memory_space<vmem>>, vector<128x16xf32>
    tpu.vector_store %arg8[%c0_14, %c0_15], %20 {strides = array<i32>} : memref<128x16xf32, #tpu.memory_space<vmem>>, vector<128x16xf32>,
    %c0_i32_16 = arith.constant 0 : i32
    %22 = arith.cmpi eq, %arg1, %c0_i32_16 : i32
    %23 = arith.extui %22 : i1 to i32
    %c0_i32_17 = arith.constant 0 : i32
    %24 = arith.cmpi ne, %23, %c0_i32_17 : i32
    scf.if %24 {
      %c0_18 = arith.constant 0 : index
      %c0_19 = arith.constant 0 : index
      %25 = vector.load %arg8[%c0_18, %c0_19] : memref<128x16xf32, #tpu.memory_space<vmem>>, vector<128x16xf32>
      %c0_20 = arith.constant 0 : index
      %c0_21 = arith.constant 0 : index
      %26 = vector.load %arg6[%c0_20, %c0_21] : memref<1x16xf32, #tpu.memory_space<vmem>>, vector<1x16xf32>
      %27 = vector.broadcast %26 : vector<1x16xf32> to vector<128x16xf32>
      %28 = arith.addf %25, %27 : vector<128x16xf32>
      %c0_22 = arith.constant 0 : index
      %c0_23 = arith.constant 0 : index
      %29 = vector.load %arg7[%c0_22, %c0_23] : memref<128x16xf32, #tpu.memory_space<vmem>>, vector<128x16xf32>
      tpu.vector_store %arg7[%c0_22, %c0_23], %28 {strides = array<i32>} : memref<128x16xf32, #tpu.memory_space<vmem>>, vector<128x16xf32>,
    } else {
    }
    return
  }
  func.func @transform_0(%arg0: i32, %arg1: i32) -> (i32, i32) {
    %c0_i32 = arith.constant 0 : i32
    %c0_i32_0 = arith.constant 0 : i32
    return %arg0, %c0_i32 : i32, i32
  }
  func.func @transform_1(%arg0: i32, %arg1: i32) -> (i32, i32) {
    %c0_i32 = arith.constant 0 : i32
    %c0_i32_0 = arith.constant 0 : i32
    return %c0_i32, %arg1 : i32, i32
  }
  func.func @transform_2(%arg0: i32, %arg1: i32) -> (i32, i32) {
    %c0_i32 = arith.constant 0 : i32
    %c0_i32_0 = arith.constant 0 : i32
    return %c0_i32, %arg1 : i32, i32
  }
  func.func @transform_3(%arg0: i32, %arg1: i32) -> (i32, i32) {
    %c0_i32 = arith.constant 0 : i32
    %c0_i32_0 = arith.constant 0 : i32
    return %arg1, %c0_i32 : i32, i32
  }
  func.func @transform_4(%arg0: i32, %arg1: i32) -> (i32, i32) {
    %c0_i32 = arith.constant 0 : i32
    %c0_i32_0 = arith.constant 0 : i32
    %c0_i32_1 = arith.constant 0 : i32
    return %c0_i32, %c0_i32_0 : i32, i32
  }
  func.func @transform_5(%arg0: i32, %arg1: i32) -> (i32, i32) {
    %c0_i32 = arith.constant 0 : i32
    %c0_i32_0 = arith.constant 0 : i32
    return %arg0, %c0_i32 : i32, i32
  }
}

</mosaic_0001>

<llo_original>
// kernel: tpu_custom_call.1
$region0: #{tpu_custom_call.1}
  #allocation0 [shape = 'u32[]', space=smem, size = 0x4, offset = 0x4, fixed_abs, tag = 'smem constant byte address 0x4 - core index']
  #allocation1 [shape = 'u32[144,128]{1,0:T(1,128)}', space=vmem, size = 0x12000, scoped, tag = 'internal scratch']
  #allocation2 [shape = 'f32[128,16]{1,0:T(8,128)}', space=vmem, size = 0x10000, scoped, tag = 'scratch operand']
  %s0 = inlined_call_operand.vmem [shape: f32[128,16], index: 0, kind: input, shape index: {}]
  %s1 = inlined_call_operand.vmem [shape: f32[16,32], index: 1, kind: input, shape index: {}]
  %s2 = inlined_call_operand.vmem [shape: f32[1,32], index: 2, kind: input, shape index: {}]
  %s3 = inlined_call_operand.vmem [shape: f32[32,16], index: 3, kind: input, shape index: {}]
  %s4 = inlined_call_operand.vmem [shape: f32[1,16], index: 4, kind: input, shape index: {}]
  %s5 = inlined_call_operand.vmem [shape: f32[128,16], index: 5, kind: output, shape index: {}]
  %s6 = sld [smem:[#allocation0]]
  $region38: #{tpu_custom_call.1} parent=0
    _
  %s8 = ssub.s32 1, %s6
  %s9 = scalar_select 0, %s8, %s6
  // Predicated region
  $region2: #{tpu_custom_call.1} parent=0 // pred_check
    _
  $region3: #{tpu_custom_call.1} parent=0 // pred_check_branch
    %11 = sbr.rel (0) target = $region5
  $region4: #{tpu_custom_call.1} parent=0 // pred_region
    _
  $region5: #{tpu_custom_call.1} parent=0 // pred_fallthru
    _
  // Predicated region
  $region6: #{tpu_custom_call.1} parent=0 // pred_check
    _
  $region7: #{tpu_custom_call.1} parent=0 // pred_check_branch
    %13 = sbr.rel (0) target = $region9
  $region8: #{tpu_custom_call.1} parent=0 // pred_region
    _
  $region9: #{tpu_custom_call.1} parent=0 // pred_fallthru
    _
  // Predicated region
  $region10: #{tpu_custom_call.1} parent=0 // pred_check
    _
  $region11: #{tpu_custom_call.1} parent=0 // pred_check_branch
    %15 = sbr.rel (0) target = $region13
  $region12: #{tpu_custom_call.1} parent=0 // pred_region
    _
  $region13: #{tpu_custom_call.1} parent=0 // pred_fallthru
    _
  // Predicated region
  $region14: #{tpu_custom_call.1} parent=0 // pred_check
    _
  $region15: #{tpu_custom_call.1} parent=0 // pred_check_branch
    %17 = sbr.rel (0) target = $region17
  $region16: #{tpu_custom_call.1} parent=0 // pred_region
    _
  $region17: #{tpu_custom_call.1} parent=0 // pred_fallthru
    _
  // Predicated region
  $region18: #{tpu_custom_call.1} parent=0 // pred_check
    _
  $region19: #{tpu_custom_call.1} parent=0 // pred_check_branch
    %19 = sbr.rel (0) target = $region21
  $region20: #{tpu_custom_call.1} parent=0 // pred_region
    _
  $region21: #{tpu_custom_call.1} parent=0 // pred_fallthru
    _
  %p20 = scmp.eq.s32.totalorder 0, 0
  // Predicated region
  $region22: #{tpu_custom_call.1} parent=0 // pred_check
    %p21 = pneg %p20
  $region23: #{tpu_custom_call.1} parent=0 // pred_check_branch
    %23 = sbr.rel (%p21) target = $region25
  $region24: #{tpu_custom_call.1} parent=0 // pred_region
    %vm24 = vcmask 130048
    %25 = vst.msk [vmem:[#allocation2] sm:$0xff] %vm24, 0.0
    %26 = vst.msk [vmem:[#allocation2 + $0x8] sm:$0xff] %vm24, 0.0
    %27 = vst.msk [vmem:[#allocation2 + $0x10] sm:$0xff] %vm24, 0.0
    %28 = vst.msk [vmem:[#allocation2 + $0x18] sm:$0xff] %vm24, 0.0
    %29 = vst.msk [vmem:[#allocation2 + $0x20] sm:$0xff] %vm24, 0.0
    %30 = vst.msk [vmem:[#allocation2 + $0x28] sm:$0xff] %vm24, 0.0
    %31 = vst.msk [vmem:[#allocation2 + $0x30] sm:$0xff] %vm24, 0.0
    %32 = vst.msk [vmem:[#allocation2 + $0x38] sm:$0xff] %vm24, 0.0
    %33 = vst.msk [vmem:[#allocation2 + $0x40] sm:$0xff] %vm24, 0.0
    %34 = vst.msk [vmem:[#allocation2 + $0x48] sm:$0xff] %vm24, 0.0
    %35 = vst.msk [vmem:[#allocation2 + $0x50] sm:$0xff] %vm24, 0.0
    %36 = vst.msk [vmem:[#allocation2 + $0x58] sm:$0xff] %vm24, 0.0
    %37 = vst.msk [vmem:[#allocation2 + $0x60] sm:$0xff] %vm24, 0.0
    %38 = vst.msk [vmem:[#allocation2 + $0x68] sm:$0xff] %vm24, 0.0
    %39 = vst.msk [vmem:[#allocation2 + $0x70] sm:$0xff] %vm24, 0.0
    %40 = vst.msk [vmem:[#allocation2 + $0x78] sm:$0xff] %vm24, 0.0
  $region25: #{tpu_custom_call.1} parent=0 // pred_fallthru
    _
  %v41 = vld [vmem:[%s0] sm:$0xff]
  %v42 = vld [vmem:[%s0 + $0x8] sm:$0xff]
  %v43 = vld [vmem:[%s0 + $0x10] sm:$0xff]
  %v44 = vld [vmem:[%s0 + $0x18] sm:$0xff]
  %v45 = vld [vmem:[%s0 + $0x20] sm:$0xff]
  %v46 = vld [vmem:[%s0 + $0x28] sm:$0xff]
  %v47 = vld [vmem:[%s0 + $0x30] sm:$0xff]
  %v48 = vld [vmem:[%s0 + $0x38] sm:$0xff]
  %v49 = vld [vmem:[%s0 + $0x40] sm:$0xff]
  %v50 = vld [vmem:[%s0 + $0x48] sm:$0xff]
  %v51 = vld [vmem:[%s0 + $0x50] sm:$0xff]
  %v52 = vld [vmem:[%s0 + $0x58] sm:$0xff]
  %v53 = vld [vmem:[%s0 + $0x60] sm:$0xff]
  %v54 = vld [vmem:[%s0 + $0x68] sm:$0xff]
  %v55 = vld [vmem:[%s0 + $0x70] sm:$0xff]
  %v56 = vld [vmem:[%s0 + $0x78] sm:$0xff]
  %v57 = vld [vmem:[%s1] sm:$0xff]
  %v58 = vld [vmem:[%s1 + $0x8] sm:$0xff]
  %v59 = vld [vmem:[%s2] sm:$0x1]
  %v61 = vlaneseq
  %v62 = vshrl.u32 %v61, 7
  %v63 = vsub.s32 0, %v62
  %v64 = vrot.slane %v59, %v63
  %vm66 = vcmask 130048
  %v68 = vsel %vm66, %v41, 0
  %v71 = vsel %vm66, %v42, 0
  %v74 = vsel %vm66, %v43, 0
  %v77 = vsel %vm66, %v44, 0
  %v80 = vsel %vm66, %v45, 0
  %v83 = vsel %vm66, %v46, 0
  %v86 = vsel %vm66, %v47, 0
  %v89 = vsel %vm66, %v48, 0
  %v92 = vsel %vm66, %v49, 0
  %v95 = vsel %vm66, %v50, 0
  %v98 = vsel %vm66, %v51, 0
  %v101 = vsel %vm66, %v52, 0
  %v104 = vsel %vm66, %v53, 0
  %v107 = vsel %vm66, %v54, 0
  %v110 = vsel %vm66, %v55, 0
  %v113 = vsel %vm66, %v56, 0
  %115 = vmatprep.subr.mxu0 0.0
  %116 = vmatpush1.msra.mxu0 %v57
  %117 = vmatprep.subr.mxu0 0.0
  %118 = vmatpush1.msra.mxu0 %v58
  %119 = vmatprep.subr.mxu0 0.0
  %120 = vmatpush1.msra.mxu0 0.0
  %121 = vmatprep.subr.mxu0 0.0
  %122 = vmatpush1.msra.mxu0 0.0
  %123 = vmatprep.subr.mxu0 0.0
  %124 = vmatpush1.msra.mxu0 0.0
  %125 = vmatprep.subr.mxu0 0.0
  %126 = vmatpush1.msra.mxu0 0.0
  %127 = vmatprep.subr.mxu0 0.0
  %128 = vmatpush1.msra.mxu0 0.0
  %129 = vmatprep.subr.mxu0 0.0
  %130 = vmatpush1.msra.mxu0 0.0
  %131 = vmatprep.subr.mxu0 0.0
  %132 = vmatpush1.msra.mxu0 0.0
  %133 = vmatprep.subr.mxu0 0.0
  %134 = vmatpush1.msra.mxu0 0.0
  %135 = vmatprep.subr.mxu0 0.0
  %136 = vmatpush1.msra.mxu0 0.0
  %137 = vmatprep.subr.mxu0 0.0
  %138 = vmatpush1.msra.mxu0 0.0
  %139 = vmatprep.subr.mxu0 0.0
  %140 = vmatpush1.msra.mxu0 0.0
  %141 = vmatprep.subr.mxu0 0.0
  %142 = vmatpush1.msra.mxu0 0.0
  %143 = vmatprep.subr.mxu0 0.0
  %144 = vmatpush1.msra.mxu0 0.0
  %145 = vmatprep.subr.mxu0 0.0
  %146 = vmatpush1.msra.mxu0 0.0
  %147 = vmatprep.subr.mxu0 0.0
  %148 = vmatpush1.msra.mxu0 0.0
  %149 = vmatprep.subr.mxu0 0.0
  %150 = vmatpush1.msra.mxu0 0.0
  %151 = vmatprep.subr.mxu0 0.0
  %152 = vmatpush1.msra.mxu0 0.0
  %153 = vmatprep.subr.mxu0 0.0
  %154 = vmatpush1.msra.mxu0 0.0
  %155 = vmatprep.subr.mxu0 0.0
  %156 = vmatpush1.msra.mxu0 0.0
  %157 = vmatprep.subr.mxu0 0.0
  %158 = vmatpush1.msra.mxu0 0.0
  %159 = vmatprep.subr.mxu0 0.0
  %160 = vmatpush1.msra.mxu0 0.0
  %161 = vmatprep.subr.mxu0 0.0
  %162 = vmatpush1.msra.mxu0 0.0
  %163 = vmatprep.subr.mxu0 0.0
  %164 = vmatpush1.msra.mxu0 0.0
  %165 = vmatprep.subr.mxu0 0.0
  %166 = vmatpush1.msra.mxu0 0.0
  %167 = vmatprep.subr.mxu0 0.0
  %168 = vmatpush1.msra.mxu0 0.0
  %169 = vmatprep.subr.mxu0 0.0
  %170 = vmatpush1.msra.mxu0 0.0
  %171 = vmatprep.subr.mxu0 0.0
  %172 = vmatpush1.msra.mxu0 0.0
  %173 = vmatprep.subr.mxu0 0.0
  %174 = vmatpush1.msra.mxu0 0.0
  %175 = vmatprep.subr.mxu0 0.0
  %176 = vmatpush1.msra.mxu0 0.0
  %177 = vmatprep.subr.mxu0 0.0
  %178 = vmatpush1.msra.mxu0 0.0
  %179 = vmatprep.mubr.f32.mxu0 0.0
  %180 = vmatmul.mubr.f32.gmra.mrb[0].mxu0 %v68
  %v181 = vpop.f32.mrb[0].mxu0
  %v182 = vadd.f32 %v64, %v181
  %v183 = vpop.f32.mrb[0].mxu0
  %184 = vmatprep.mubr.f32.mxu0 0.0
  %185 = vmatmul.mubr.f32.gmra.mrb[0].mxu0 %v71
  %v186 = vpop.f32.mrb[0].mxu0
  %v187 = vadd.f32 %v64, %v186
  %v188 = vpop.f32.mrb[0].mxu0
  %189 = vmatprep.mubr.f32.mxu0 0.0
  %190 = vmatmul.mubr.f32.gmra.mrb[0].mxu0 %v74
  %v191 = vpop.f32.mrb[0].mxu0
  %v192 = vadd.f32 %v64, %v191
  %v193 = vpop.f32.mrb[0].mxu0
  %194 = vmatprep.mubr.f32.mxu0 0.0
  %195 = vmatmul.mubr.f32.gmra.mrb[0].mxu0 %v77
  %v196 = vpop.f32.mrb[0].mxu0
  %v197 = vadd.f32 %v64, %v196
  %v198 = vpop.f32.mrb[0].mxu0
  %199 = vmatprep.mubr.f32.mxu0 0.0
  %200 = vmatmul.mubr.f32.gmra.mrb[0].mxu0 %v80
  %v201 = vpop.f32.mrb[0].mxu0
  %v202 = vadd.f32 %v64, %v201
  %v203 = vpop.f32.mrb[0].mxu0
  %204 = vmatprep.mubr.f32.mxu0 0.0
  %205 = vmatmul.mubr.f32.gmra.mrb[0].mxu0 %v83
  %v206 = vpop.f32.mrb[0].mxu0
  %v207 = vadd.f32 %v64, %v206
  %v208 = vpop.f32.mrb[0].mxu0
  %209 = vmatprep.mubr.f32.mxu0 0.0
  %210 = vmatmul.mubr.f32.gmra.mrb[0].mxu0 %v86
  %v211 = vpop.f32.mrb[0].mxu0
  %v212 = vadd.f32 %v64, %v211
  %v213 = vpop.f32.mrb[0].mxu0
  %214 = vmatprep.mubr.f32.mxu0 0.0
  %215 = vmatmul.mubr.f32.gmra.mrb[0].mxu0 %v89
  %v216 = vpop.f32.mrb[0].mxu0
  %v217 = vadd.f32 %v64, %v216
  %v218 = vpop.f32.mrb[0].mxu0
  %219 = vmatprep.mubr.f32.mxu0 0.0
  %220 = vmatmul.mubr.f32.gmra.mrb[0].mxu0 %v92
  %v221 = vpop.f32.mrb[0].mxu0
  %v222 = vadd.f32 %v64, %v221
  %v223 = vpop.f32.mrb[0].mxu0
  %224 = vmatprep.mubr.f32.mxu0 0.0
  %225 = vmatmul.mubr.f32.gmra.mrb[0].mxu0 %v95
  %v226 = vpop.f32.mrb[0].mxu0
  %v227 = vadd.f32 %v64, %v226
  %v228 = vpop.f32.mrb[0].mxu0
  %229 = vmatprep.mubr.f32.mxu0 0.0
  %230 = vmatmul.mubr.f32.gmra.mrb[0].mxu0 %v98
  %v231 = vpop.f32.mrb[0].mxu0
  %v232 = vadd.f32 %v64, %v231
  %v233 = vpop.f32.mrb[0].mxu0
  %234 = vmatprep.mubr.f32.mxu0 0.0
  %235 = vmatmul.mubr.f32.gmra.mrb[0].mxu0 %v101
  %v236 = vpop.f32.mrb[0].mxu0
  %v237 = vadd.f32 %v64, %v236
  %v238 = vpop.f32.mrb[0].mxu0
  %239 = vmatprep.mubr.f32.mxu0 0.0
  %240 = vmatmul.mubr.f32.gmra.mrb[0].mxu0 %v104
  %v241 = vpop.f32.mrb[0].mxu0
  %v242 = vadd.f32 %v64, %v241
  %v243 = vpop.f32.mrb[0].mxu0
  %244 = vmatprep.mubr.f32.mxu0 0.0
  %245 = vmatmul.mubr.f32.gmra.mrb[0].mxu0 %v107
  %v246 = vpop.f32.mrb[0].mxu0
  %v247 = vadd.f32 %v64, %v246
  %v248 = vpop.f32.mrb[0].mxu0
  %249 = vmatprep.mubr.f32.mxu0 0.0
  %250 = vmatmul.mubr.f32.gmra.mrb[0].mxu0 %v110
  %v251 = vpop.f32.mrb[0].mxu0
  %v252 = vadd.f32 %v64, %v251
  %v253 = vpop.f32.mrb[0].mxu0
  %254 = vmatprep.mubr.f32.mxu0 0.0
  %255 = vmatmul.mubr.f32.gmra.mrb[0].mxu0 %v113
  %v256 = vpop.f32.mrb[0].mxu0
  %v257 = vadd.f32 %v64, %v256
  %v258 = vpop.f32.mrb[0].mxu0
  %259 = vdwg.mxu0
  %v260 = vmul.f32 %v182, 0.5
  %v261 = vmul.f32 %v187, 0.5
  %v262 = vmul.f32 %v192, 0.5
  %v263 = vmul.f32 %v197, 0.5
  %v264 = vmul.f32 %v202, 0.5
  %v265 = vmul.f32 %v207, 0.5
  %v266 = vmul.f32 %v212, 0.5
  %v267 = vmul.f32 %v217, 0.5
  %v268 = vmul.f32 %v222, 0.5
  %v269 = vmul.f32 %v227, 0.5
  %v270 = vmul.f32 %v232, 0.5
  %v271 = vmul.f32 %v237, 0.5
  %v272 = vmul.f32 %v242, 0.5
  %v273 = vmul.f32 %v247, 0.5
  %v274 = vmul.f32 %v252, 0.5
  %v275 = vmul.f32 %v257, 0.5
  %v276 = vmul.f32 %v182, 0.70710677
  %v277 = vmul.f32 %v187, 0.70710677
  %v278 = vmul.f32 %v192, 0.70710677
  %v279 = vmul.f32 %v197, 0.70710677
  %v280 = vmul.f32 %v202, 0.70710677
  %v281 = vmul.f32 %v207, 0.70710677
  %v282 = vmul.f32 %v212, 0.70710677
  %v283 = vmul.f32 %v217, 0.70710677
  %v284 = vmul.f32 %v222, 0.70710677
  %v285 = vmul.f32 %v227, 0.70710677
  %v286 = vmul.f32 %v232, 0.70710677
  %v287 = vmul.f32 %v237, 0.70710677
  %v288 = vmul.f32 %v242, 0.70710677
  %v289 = vmul.f32 %v247, 0.70710677
  %v290 = vmul.f32 %v252, 0.70710677
  %v291 = vmul.f32 %v257, 0.70710677
  %v292 = verf.f32.pop %v276
  %v293 = verf.f32.pop %v277
  %v294 = verf.f32.pop %v278
  %v295 = verf.f32.pop %v279
  %v296 = verf.f32.pop %v280
  %v297 = verf.f32.pop %v281
  %v298 = verf.f32.pop %v282
  %v299 = verf.f32.pop %v283
  %v300 = verf.f32.pop %v284
  %v301 = verf.f32.pop %v285
  %v302 = verf.f32.pop %v286
  %v303 = verf.f32.pop %v287
  %v304 = verf.f32.pop %v288
  %v305 = verf.f32.pop %v289
  %v306 = verf.f32.pop %v290
  %v307 = verf.f32.pop %v291
  %v308 = vadd.f32 %v292, 1.0
  %v309 = vadd.f32 %v293, 1.0
  %v310 = vadd.f32 %v294, 1.0
  %v311 = vadd.f32 %v295, 1.0
  %v312 = vadd.f32 %v296, 1.0
  %v313 = vadd.f32 %v297, 1.0
  %v314 = vadd.f32 %v298, 1.0
  %v315 = vadd.f32 %v299, 1.0
  %v316 = vadd.f32 %v300, 1.0
  %v317 = vadd.f32 %v301, 1.0
  %v318 = vadd.f32 %v302, 1.0
  %v319 = vadd.f32 %v303, 1.0
  %v320 = vadd.f32 %v304, 1.0
  %v321 = vadd.f32 %v305, 1.0
  %v322 = vadd.f32 %v306, 1.0
  %v323 = vadd.f32 %v307, 1.0
  %v324 = vmul.f32 %v260, %v308
  %v325 = vmul.f32 %v261, %v309
  %v326 = vmul.f32 %v262, %v310
  %v327 = vmul.f32 %v263, %v311
  %v328 = vmul.f32 %v264, %v312
  %v329 = vmul.f32 %v265, %v313
  %v330 = vmul.f32 %v266, %v314
  %v331 = vmul.f32 %v267, %v315
  %v332 = vmul.f32 %v268, %v316
  %v333 = vmul.f32 %v269, %v317
  %v334 = vmul.f32 %v270, %v318
  %v335 = vmul.f32 %v271, %v319
  %v336 = vmul.f32 %v272, %v320
  %v337 = vmul.f32 %v273, %v321
  %v338 = vmul.f32 %v274, %v322
  %v339 = vmul.f32 %v275, %v323
  %v340 = vld [vmem:[#allocation2] sm:$0xff]
  %v341 = vld [vmem:[#allocation2 + $0x8] sm:$0xff]
  %v342 = vld [vmem:[#allocation2 + $0x10] sm:$0xff]
  %v343 = vld [vmem:[#allocation2 + $0x18] sm:$0xff]
  %v344 = vld [vmem:[#allocation2 + $0x20] sm:$0xff]
  %v345 = vld [vmem:[#allocation2 + $0x28] sm:$0xff]
  %v346 = vld [vmem:[#allocation2 + $0x30] sm:$0xff]
  %v347 = vld [vmem:[#allocation2 + $0x38] sm:$0xff]
  %v348 = vld [vmem:[#allocation2 + $0x40] sm:$0xff]
  %v349 = vld [vmem:[#allocation2 + $0x48] sm:$0xff]
  %v350 = vld [vmem:[#allocation2 + $0x50] sm:$0xff]
  %v351 = vld [vmem:[#allocation2 + $0x58] sm:$0xff]
  %v352 = vld [vmem:[#allocation2 + $0x60] sm:$0xff]
  %v353 = vld [vmem:[#allocation2 + $0x68] sm:$0xff]
  %v354 = vld [vmem:[#allocation2 + $0x70] sm:$0xff]
  %v355 = vld [vmem:[#allocation2 + $0x78] sm:$0xff]
  %v356 = vld [vmem:[%s3] sm:$0xff]
  %v357 = vld [vmem:[%s3 + $0x8] sm:$0xff]
  %v358 = vld [vmem:[%s3 + $0x10] sm:$0xff]
  %v359 = vld [vmem:[%s3 + $0x18] sm:$0xff]
  %vm360 = vcmask 261120
  %v362 = vsel %vm360, %v324, 0
  %v365 = vsel %vm360, %v325, 0
  %v368 = vsel %vm360, %v326, 0
  %v371 = vsel %vm360, %v327, 0
  %v374 = vsel %vm360, %v328, 0
  %v377 = vsel %vm360, %v329, 0
  %v380 = vsel %vm360, %v330, 0
  %v383 = vsel %vm360, %v331, 0
  %v386 = vsel %vm360, %v332, 0
  %v389 = vsel %vm360, %v333, 0
  %v392 = vsel %vm360, %v334, 0
  %v395 = vsel %vm360, %v335, 0
  %v398 = vsel %vm360, %v336, 0
  %v401 = vsel %vm360, %v337, 0
  %v404 = vsel %vm360, %v338, 0
  %v407 = vsel %vm360, %v339, 0
  %409 = vmatprep.subr.mxu0 0.0
  %410 = vmatpush1.msra.mxu0 %v356
  %411 = vmatprep.subr.mxu0 0.0
  %412 = vmatpush1.msra.mxu0 %v357
  %413 = vmatprep.subr.mxu0 0.0
  %414 = vmatpush1.msra.mxu0 %v358
  %415 = vmatprep.subr.mxu0 0.0
  %416 = vmatpush1.msra.mxu0 %v359
  %417 = vmatprep.subr.mxu0 0.0
  %418 = vmatpush1.msra.mxu0 0.0
  %419 = vmatprep.subr.mxu0 0.0
  %420 = vmatpush1.msra.mxu0 0.0
  %421 = vmatprep.subr.mxu0 0.0
  %422 = vmatpush1.msra.mxu0 0.0
  %423 = vmatprep.subr.mxu0 0.0
  %424 = vmatpush1.msra.mxu0 0.0
  %425 = vmatprep.subr.mxu0 0.0
  %426 = vmatpush1.msra.mxu0 0.0
  %427 = vmatprep.subr.mxu0 0.0
  %428 = vmatpush1.msra.mxu0 0.0
  %429 = vmatprep.subr.mxu0 0.0
  %430 = vmatpush1.msra.mxu0 0.0
  %431 = vmatprep.subr.mxu0 0.0
  %432 = vmatpush1.msra.mxu0 0.0
  %433 = vmatprep.subr.mxu0 0.0
  %434 = vmatpush1.msra.mxu0 0.0
  %435 = vmatprep.subr.mxu0 0.0
  %436 = vmatpush1.msra.mxu0 0.0
  %437 = vmatprep.subr.mxu0 0.0
  %438 = vmatpush1.msra.mxu0 0.0
  %439 = vmatprep.subr.mxu0 0.0
  %440 = vmatpush1.msra.mxu0 0.0
  %441 = vmatprep.subr.mxu0 0.0
  %442 = vmatpush1.msra.mxu0 0.0
  %443 = vmatprep.subr.mxu0 0.0
  %444 = vmatpush1.msra.mxu0 0.0
  %445 = vmatprep.subr.mxu0 0.0
  %446 = vmatpush1.msra.mxu0 0.0
  %447 = vmatprep.subr.mxu0 0.0
  %448 = vmatpush1.msra.mxu0 0.0
  %449 = vmatprep.subr.mxu0 0.0
  %450 = vmatpush1.msra.mxu0 0.0
  %451 = vmatprep.subr.mxu0 0.0
  %452 = vmatpush1.msra.mxu0 0.0
  %453 = vmatprep.subr.mxu0 0.0
  %454 = vmatpush1.msra.mxu0 0.0
  %455 = vmatprep.subr.mxu0 0.0
  %456 = vmatpush1.msra.mxu0 0.0
  %457 = vmatprep.subr.mxu0 0.0
  %458 = vmatpush1.msra.mxu0 0.0
  %459 = vmatprep.subr.mxu0 0.0
  %460 = vmatpush1.msra.mxu0 0.0
  %461 = vmatprep.subr.mxu0 0.0
  %462 = vmatpush1.msra.mxu0 0.0
  %463 = vmatprep.subr.mxu0 0.0
  %464 = vmatpush1.msra.mxu0 0.0
  %465 = vmatprep.subr.mxu0 0.0
  %466 = vmatpush1.msra.mxu0 0.0
  %467 = vmatprep.subr.mxu0 0.0
  %468 = vmatpush1.msra.mxu0 0.0
  %469 = vmatprep.subr.mxu0 0.0
  %470 = vmatpush1.msra.mxu0 0.0
  %471 = vmatprep.subr.mxu0 0.0
  %472 = vmatpush1.msra.mxu0 0.0
  %473 = vmatprep.mubr.f32.mxu0 0.0
  %474 = vmatmul.mubr.f32.gmra.mrb[0].mxu0 %v362
  %v475 = vpop.f32.mrb[0].mxu0
  %v476 = vadd.f32 0.0, %v475
  %v477 = vpop.f32.mrb[0].mxu0
  %478 = vmatprep.mubr.f32.mxu0 0.0
  %479 = vmatmul.mubr.f32.gmra.mrb[0].mxu0 %v365
  %v480 = vpop.f32.mrb[0].mxu0
  %v481 = vadd.f32 0.0, %v480
  %v482 = vpop.f32.mrb[0].mxu0
  %483 = vmatprep.mubr.f32.mxu0 0.0
  %484 = vmatmul.mubr.f32.gmra.mrb[0].mxu0 %v368
  %v485 = vpop.f32.mrb[0].mxu0
  %v486 = vadd.f32 0.0, %v485
  %v487 = vpop.f32.mrb[0].mxu0
  %488 = vmatprep.mubr.f32.mxu0 0.0
  %489 = vmatmul.mubr.f32.gmra.mrb[0].mxu0 %v371
  %v490 = vpop.f32.mrb[0].mxu0
  %v491 = vadd.f32 0.0, %v490
  %v492 = vpop.f32.mrb[0].mxu0
  %493 = vmatprep.mubr.f32.mxu0 0.0
  %494 = vmatmul.mubr.f32.gmra.mrb[0].mxu0 %v374
  %v495 = vpop.f32.mrb[0].mxu0
  %v496 = vadd.f32 0.0, %v495
  %v497 = vpop.f32.mrb[0].mxu0
  %498 = vmatprep.mubr.f32.mxu0 0.0
  %499 = vmatmul.mubr.f32.gmra.mrb[0].mxu0 %v377
  %v500 = vpop.f32.mrb[0].mxu0
  %v501 = vadd.f32 0.0, %v500
  %v502 = vpop.f32.mrb[0].mxu0
  %503 = vmatprep.mubr.f32.mxu0 0.0
  %504 = vmatmul.mubr.f32.gmra.mrb[0].mxu0 %v380
  %v505 = vpop.f32.mrb[0].mxu0
  %v506 = vadd.f32 0.0, %v505
  %v507 = vpop.f32.mrb[0].mxu0
  %508 = vmatprep.mubr.f32.mxu0 0.0
  %509 = vmatmul.mubr.f32.gmra.mrb[0].mxu0 %v383
  %v510 = vpop.f32.mrb[0].mxu0
  %v511 = vadd.f32 0.0, %v510
  %v512 = vpop.f32.mrb[0].mxu0
  %513 = vmatprep.mubr.f32.mxu0 0.0
  %514 = vmatmul.mubr.f32.gmra.mrb[0].mxu0 %v386
  %v515 = vpop.f32.mrb[0].mxu0
  %v516 = vadd.f32 0.0, %v515
  %v517 = vpop.f32.mrb[0].mxu0
  %518 = vmatprep.mubr.f32.mxu0 0.0
  %519 = vmatmul.mubr.f32.gmra.mrb[0].mxu0 %v389
  %v520 = vpop.f32.mrb[0].mxu0
  %v521 = vadd.f32 0.0, %v520
  %v522 = vpop.f32.mrb[0].mxu0
  %523 = vmatprep.mubr.f32.mxu0 0.0
  %524 = vmatmul.mubr.f32.gmra.mrb[0].mxu0 %v392
  %v525 = vpop.f32.mrb[0].mxu0
  %v526 = vadd.f32 0.0, %v525
  %v527 = vpop.f32.mrb[0].mxu0
  %528 = vmatprep.mubr.f32.mxu0 0.0
  %529 = vmatmul.mubr.f32.gmra.mrb[0].mxu0 %v395
  %v530 = vpop.f32.mrb[0].mxu0
  %v531 = vadd.f32 0.0, %v530
  %v532 = vpop.f32.mrb[0].mxu0
  %533 = vmatprep.mubr.f32.mxu0 0.0
  %534 = vmatmul.mubr.f32.gmra.mrb[0].mxu0 %v398
  %v535 = vpop.f32.mrb[0].mxu0
  %v536 = vadd.f32 0.0, %v535
  %v537 = vpop.f32.mrb[0].mxu0
  %538 = vmatprep.mubr.f32.mxu0 0.0
  %539 = vmatmul.mubr.f32.gmra.mrb[0].mxu0 %v401
  %v540 = vpop.f32.mrb[0].mxu0
  %v541 = vadd.f32 0.0, %v540
  %v542 = vpop.f32.mrb[0].mxu0
  %543 = vmatprep.mubr.f32.mxu0 0.0
  %544 = vmatmul.mubr.f32.gmra.mrb[0].mxu0 %v404
  %v545 = vpop.f32.mrb[0].mxu0
  %v546 = vadd.f32 0.0, %v545
  %v547 = vpop.f32.mrb[0].mxu0
  %548 = vmatprep.mubr.f32.mxu0 0.0
  %549 = vmatmul.mubr.f32.gmra.mrb[0].mxu0 %v407
  %v550 = vpop.f32.mrb[0].mxu0
  %v551 = vadd.f32 0.0, %v550
  %v552 = vpop.f32.mrb[0].mxu0
  %553 = vdwg.mxu0
  %v554 = vadd.f32 %v340, %v476
  %v555 = vadd.f32 %v341, %v481
  %v556 = vadd.f32 %v342, %v486
  %v557 = vadd.f32 %v343, %v491
  %v558 = vadd.f32 %v344, %v496
  %v559 = vadd.f32 %v345, %v501
  %v560 = vadd.f32 %v346, %v506
  %v561 = vadd.f32 %v347, %v511
  %v562 = vadd.f32 %v348, %v516
  %v563 = vadd.f32 %v349, %v521
  %v564 = vadd.f32 %v350, %v526
  %v565 = vadd.f32 %v351, %v531
  %v566 = vadd.f32 %v352, %v536
  %v567 = vadd.f32 %v353, %v541
  %v568 = vadd.f32 %v354, %v546
  %v569 = vadd.f32 %v355, %v551
  %570 = vst.msk [vmem:[#allocation2] sm:$0xff] %vm66, %v554
  %571 = vst.msk [vmem:[#allocation2 + $0x8] sm:$0xff] %vm66, %v555
  %572 = vst.msk [vmem:[#allocation2 + $0x10] sm:$0xff] %vm66, %v556
  %573 = vst.msk [vmem:[#allocation2 + $0x18] sm:$0xff] %vm66, %v557
  %574 = vst.msk [vmem:[#allocation2 + $0x20] sm:$0xff] %vm66, %v558
  %575 = vst.msk [vmem:[#allocation2 + $0x28] sm:$0xff] %vm66, %v559
  %576 = vst.msk [vmem:[#allocation2 + $0x30] sm:$0xff] %vm66, %v560
  %577 = vst.msk [vmem:[#allocation2 + $0x38] sm:$0xff] %vm66, %v561
  %578 = vst.msk [vmem:[#allocation2 + $0x40] sm:$0xff] %vm66, %v562
  %579 = vst.msk [vmem:[#allocation2 + $0x48] sm:$0xff] %vm66, %v563
  %580 = vst.msk [vmem:[#allocation2 + $0x50] sm:$0xff] %vm66, %v564
  %581 = vst.msk [vmem:[#allocation2 + $0x58] sm:$0xff] %vm66, %v565
  %582 = vst.msk [vmem:[#allocation2 + $0x60] sm:$0xff] %vm66, %v566
  %583 = vst.msk [vmem:[#allocation2 + $0x68] sm:$0xff] %vm66, %v567
  %584 = vst.msk [vmem:[#allocation2 + $0x70] sm:$0xff] %vm66, %v568
  %585 = vst.msk [vmem:[#allocation2 + $0x78] sm:$0xff] %vm66, %v569
  // Predicated region
  $region26: #{tpu_custom_call.1} parent=0 // pred_check
    %p586 = pneg %p20
  $region27: #{tpu_custom_call.1} parent=0 // pred_check_branch
    %588 = sbr.rel (%p586) target = $region29
  $region28: #{tpu_custom_call.1} parent=0 // pred_region
    %v589 = vld [vmem:[#allocation2] sm:$0xff]
    %v590 = vld [vmem:[#allocation2 + $0x8] sm:$0xff]
    %v591 = vld [vmem:[#allocation2 + $0x10] sm:$0xff]
    %v592 = vld [vmem:[#allocation2 + $0x18] sm:$0xff]
    %v593 = vld [vmem:[#allocation2 + $0x20] sm:$0xff]
    %v594 = vld [vmem:[#allocation2 + $0x28] sm:$0xff]
    %v595 = vld [vmem:[#allocation2 + $0x30] sm:$0xff]
    %v596 = vld [vmem:[#allocation2 + $0x38] sm:$0xff]
    %v597 = vld [vmem:[#allocation2 + $0x40] sm:$0xff]
    %v598 = vld [vmem:[#allocation2 + $0x48] sm:$0xff]
    %v599 = vld [vmem:[#allocation2 + $0x50] sm:$0xff]
    %v600 = vld [vmem:[#allocation2 + $0x58] sm:$0xff]
    %v601 = vld [vmem:[#allocation2 + $0x60] sm:$0xff]
    %v602 = vld [vmem:[#allocation2 + $0x68] sm:$0xff]
    %v603 = vld [vmem:[#allocation2 + $0x70] sm:$0xff]
    %v604 = vld [vmem:[#allocation2 + $0x78] sm:$0xff]
    %v605 = vld [vmem:[%s4] sm:$0x1]
    %v607 = vlaneseq
    %v608 = vshrl.u32 %v607, 7
    %v609 = vsub.s32 0, %v608
    %v610 = vrot.slane %v605, %v609
    %v612 = vadd.f32 %v589, %v610
    %v613 = vadd.f32 %v590, %v610
    %v614 = vadd.f32 %v591, %v610
    %v615 = vadd.f32 %v592, %v610
    %v616 = vadd.f32 %v593, %v610
    %v617 = vadd.f32 %v594, %v610
    %v618 = vadd.f32 %v595, %v610
    %v619 = vadd.f32 %v596, %v610
    %v620 = vadd.f32 %v597, %v610
    %v621 = vadd.f32 %v598, %v610
    %v622 = vadd.f32 %v599, %v610
    %v623 = vadd.f32 %v600, %v610
    %v624 = vadd.f32 %v601, %v610
    %v625 = vadd.f32 %v602, %v610
    %v626 = vadd.f32 %v603, %v610
    %v627 = vadd.f32 %v604, %v610
    %628 = vst.msk [vmem:[%s5] sm:$0xff] %vm66, %v612
    %629 = vst.msk [vmem:[%s5 + $0x8] sm:$0xff] %vm66, %v613
    %630 = vst.msk [vmem:[%s5 + $0x10] sm:$0xff] %vm66, %v614
    %631 = vst.msk [vmem:[%s5 + $0x18] sm:$0xff] %vm66, %v615
    %632 = vst.msk [vmem:[%s5 + $0x20] sm:$0xff] %vm66, %v616
    %633 = vst.msk [vmem:[%s5 + $0x28] sm:$0xff] %vm66, %v617
    %634 = vst.msk [vmem:[%s5 + $0x30] sm:$0xff] %vm66, %v618
    %635 = vst.msk [vmem:[%s5 + $0x38] sm:$0xff] %vm66, %v619
    %636 = vst.msk [vmem:[%s5 + $0x40] sm:$0xff] %vm66, %v620
    %637 = vst.msk [vmem:[%s5 + $0x48] sm:$0xff] %vm66, %v621
    %638 = vst.msk [vmem:[%s5 + $0x50] sm:$0xff] %vm66, %v622
    %639 = vst.msk [vmem:[%s5 + $0x58] sm:$0xff] %vm66, %v623
    %640 = vst.msk [vmem:[%s5 + $0x60] sm:$0xff] %vm66, %v624
    %641 = vst.msk [vmem:[%s5 + $0x68] sm:$0xff] %vm66, %v625
    %642 = vst.msk [vmem:[%s5 + $0x70] sm:$0xff] %vm66, %v626
    %643 = vst.msk [vmem:[%s5 + $0x78] sm:$0xff] %vm66, %v627
  $region29: #{tpu_custom_call.1} parent=0 // pred_fallthru
    _
  // Predicated region
  $region30: #{tpu_custom_call.1} parent=0 // pred_check
    _
  $region31: #{tpu_custom_call.1} parent=0 // pred_check_branch
    %645 = sbr.rel (0) target = $region33
  $region32: #{tpu_custom_call.1} parent=0 // pred_region
    _
  $region33: #{tpu_custom_call.1} parent=0 // pred_fallthru
    _
  // Predicated region
  $region34: #{tpu_custom_call.1} parent=0 // pred_check
    _
  $region35: #{tpu_custom_call.1} parent=0 // pred_check_branch
    %647 = sbr.rel (0) target = $region37
  $region36: #{tpu_custom_call.1} parent=0 // pred_region
    _
  $region37: #{tpu_custom_call.1} parent=0 // pred_fallthru
    _

// kernel: tpu_custom_call.1
$region0: #{tpu_custom_call.1}
  #allocation0 [shape = 'u32[]', space=smem, size = 0x4, offset = 0x4, fixed_abs, tag = 'smem constant byte address 0x4 - core index']
  #allocation1 [shape = 'u32[144,128]{1,0:T(1,128)}', space=vmem, size = 0x12000, scoped, tag = 'internal scratch']
  #allocation2 [shape = 'f32[128,16]{1,0:T(8,128)}', space=vmem, size = 0x10000, scoped, tag = 'scratch operand']
  %s0 = inlined_call_operand.vmem [shape: f32[128,16], index: 0, kind: input, shape index: {}]
  %s1 = inlined_call_operand.vmem [shape: f32[16,32], index: 1, kind: input, shape index: {}]
  %s2 = inlined_call_operand.vmem [shape: f32[1,32], index: 2, kind: input, shape index: {}]
  %s3 = inlined_call_operand.vmem [shape: f32[32,16], index: 3, kind: input, shape index: {}]
  %s4 = inlined_call_operand.vmem [shape: f32[1,16], index: 4, kind: input, shape index: {}]
  %s5 = inlined_call_operand.vmem [shape: f32[128,16], index: 5, kind: output, shape index: {}]
  %s6 = sld [smem:[#allocation0]]
  $region38: #{tpu_custom_call.1} parent=0
    _
  %s8 = ssub.s32 1, %s6
  %s9 = scalar_select 0, %s8, %s6
  // Predicated region
  $region2: #{tpu_custom_call.1} parent=0 // pred_check
    _
  $region3: #{tpu_custom_call.1} parent=0 // pred_check_branch
    %11 = sbr.rel (0) target = $region5
  $region4: #{tpu_custom_call.1} parent=0 // pred_region
    _
  $region5: #{tpu_custom_call.1} parent=0 // pred_fallthru
    _
  // Predicated region
  $region6: #{tpu_custom_call.1} parent=0 // pred_check
    _
  $region7: #{tpu_custom_call.1} parent=0 // pred_check_branch
    %13 = sbr.rel (0) target = $region9
  $region8: #{tpu_custom_call.1} parent=0 // pred_region
    _
  $region9: #{tpu_custom_call.1} parent=0 // pred_fallthru
    _
  // Predicated region
  $region10: #{tpu_custom_call.1} parent=0 // pred_check
    _
  $region11: #{tpu_custom_call.1} parent=0 // pred_check_branch
    %15 = sbr.rel (0) target = $region13
  $region12: #{tpu_custom_call.1} parent=0 // pred_region
    _
  $region13: #{tpu_custom_call.1} parent=0 // pred_fallthru
    _
  // Predicated region
  $region14: #{tpu_custom_call.1} parent=0 // pred_check
    _
  $region15: #{tpu_custom_call.1} parent=0 // pred_check_branch
    %17 = sbr.rel (0) target = $region17
  $region16: #{tpu_custom_call.1} parent=0 // pred_region
    _
  $region17: #{tpu_custom_call.1} parent=0 // pred_fallthru
    _
  // Predicated region
  $region18: #{tpu_custom_call.1} parent=0 // pred_check
    _
  $region19: #{tpu_custom_call.1} parent=0 // pred_check_branch
    %19 = sbr.rel (0) target = $region21
  $region20: #{tpu_custom_call.1} parent=0 // pred_region
    _
  $region21: #{tpu_custom_call.1} parent=0 // pred_fallthru
    _
  %p20 = scmp.eq.s32.totalorder 0, 0
  // Predicated region
  $region22: #{tpu_custom_call.1} parent=0 // pred_check
    %p21 = pneg %p20
  $region23: #{tpu_custom_call.1} parent=0 // pred_check_branch
    %23 = sbr.rel (%p21) target = $region25
  $region24: #{tpu_custom_call.1} parent=0 // pred_region
    %vm24 = vcmask 130048
    %25 = vst.msk [vmem:[#allocation2] sm:$0xff] %vm24, 0.0
    %26 = vst.msk [vmem:[#allocation2 + $0x8] sm:$0xff] %vm24, 0.0
    %27 = vst.msk [vmem:[#allocation2 + $0x10] sm:$0xff] %vm24, 0.0
    %28 = vst.msk [vmem:[#allocation2 + $0x18] sm:$0xff] %vm24, 0.0
    %29 = vst.msk [vmem:[#allocation2 + $0x20] sm:$0xff] %vm24, 0.0
    %30 = vst.msk [vmem:[#allocation2 + $0x28] sm:$0xff] %vm24, 0.0
    %31 = vst.msk [vmem:[#allocation2 + $0x30] sm:$0xff] %vm24, 0.0
    %32 = vst.msk [vmem:[#allocation2 + $0x38] sm:$0xff] %vm24, 0.0
    %33 = vst.msk [vmem:[#allocation2 + $0x40] sm:$0xff] %vm24, 0.0
    %34 = vst.msk [vmem:[#allocation2 + $0x48] sm:$0xff] %vm24, 0.0
    %35 = vst.msk [vmem:[#allocation2 + $0x50] sm:$0xff] %vm24, 0.0
    %36 = vst.msk [vmem:[#allocation2 + $0x58] sm:$0xff] %vm24, 0.0
    %37 = vst.msk [vmem:[#allocation2 + $0x60] sm:$0xff] %vm24, 0.0
    %38 = vst.msk [vmem:[#allocation2 + $0x68] sm:$0xff] %vm24, 0.0
    %39 = vst.msk [vmem:[#allocation2 + $0x70] sm:$0xff] %vm24, 0.0
    %40 = vst.msk [vmem:[#allocation2 + $0x78] sm:$0xff] %vm24, 0.0
  $region25: #{tpu_custom_call.1} parent=0 // pred_fallthru
    _
  %v41 = vld [vmem:[%s0] sm:$0xff]
  %v42 = vld [vmem:[%s0 + $0x8] sm:$0xff]
  %v43 = vld [vmem:[%s0 + $0x10] sm:$0xff]
  %v44 = vld [vmem:[%s0 + $0x18] sm:$0xff]
  %v45 = vld [vmem:[%s0 + $0x20] sm:$0xff]
  %v46 = vld [vmem:[%s0 + $0x28] sm:$0xff]
  %v47 = vld [vmem:[%s0 + $0x30] sm:$0xff]
  %v48 = vld [vmem:[%s0 + $0x38] sm:$0xff]
  %v49 = vld [vmem:[%s0 + $0x40] sm:$0xff]
  %v50 = vld [vmem:[%s0 + $0x48] sm:$0xff]
  %v51 = vld [vmem:[%s0 + $0x50] sm:$0xff]
  %v52 = vld [vmem:[%s0 + $0x58] sm:$0xff]
  %v53 = vld [vmem:[%s0 + $0x60] sm:$0xff]
  %v54 = vld [vmem:[%s0 + $0x68] sm:$0xff]
  %v55 = vld [vmem:[%s0 + $0x70] sm:$0xff]
  %v56 = vld [vmem:[%s0 + $0x78] sm:$0xff]
  %v57 = vld [vmem:[%s1] sm:$0xff]
  %v58 = vld [vmem:[%s1 + $0x8] sm:$0xff]
  %v59 = vld [vmem:[%s2] sm:$0x1]
  %v61 = vlaneseq
  %v62 = vshrl.u32 %v61, 7
  %v63 = vsub.s32 0, %v62
  %v64 = vrot.slane %v59, %v63
  %vm66 = vcmask 130048
  %v68 = vsel %vm66, %v41, 0
  %v71 = vsel %vm66, %v42, 0
  %v74 = vsel %vm66, %v43, 0
  %v77 = vsel %vm66, %v44, 0
  %v80 = vsel %vm66, %v45, 0
  %v83 = vsel %vm66, %v46, 0
  %v86 = vsel %vm66, %v47, 0
  %v89 = vsel %vm66, %v48, 0
  %v92 = vsel %vm66, %v49, 0
  %v95 = vsel %vm66, %v50, 0
  %v98 = vsel %vm66, %v51, 0
  %v101 = vsel %vm66, %v52, 0
  %v104 = vsel %vm66, %v53, 0
  %v107 = vsel %vm66, %v54, 0
  %v110 = vsel %vm66, %v55, 0
  %v113 = vsel %vm66, %v56, 0
  %115 = vmatprep.subr.mxu0 0.0
  %116 = vmatpush1.msra.mxu0 %v57
  %117 = vmatprep.subr.mxu0 0.0
  %118 = vmatpush1.msra.mxu0 %v58
  %119 = vmatprep.subr.mxu0 0.0
  %120 = vmatpush1.msra.mxu0 0.0
  %121 = vmatprep.subr.mxu0 0.0
  %122 = vmatpush1.msra.mxu0 0.0
  %123 = vmatprep.subr.mxu0 0.0
  %124 = vmatpush1.msra.mxu0 0.0
  %125 = vmatprep.subr.mxu0 0.0
  %126 = vmatpush1.msra.mxu0 0.0
  %127 = vmatprep.subr.mxu0 0.0
  %128 = vmatpush1.msra.mxu0 0.0
  %129 = vmatprep.subr.mxu0 0.0
  %130 = vmatpush1.msra.mxu0 0.0
  %131 = vmatprep.subr.mxu0 0.0
  %132 = vmatpush1.msra.mxu0 0.0
  %133 = vmatprep.subr.mxu0 0.0
  %134 = vmatpush1.msra.mxu0 0.0
  %135 = vmatprep.subr.mxu0 0.0
  %136 = vmatpush1.msra.mxu0 0.0
  %137 = vmatprep.subr.mxu0 0.0
  %138 = vmatpush1.msra.mxu0 0.0
  %139 = vmatprep.subr.mxu0 0.0
  %140 = vmatpush1.msra.mxu0 0.0
  %141 = vmatprep.subr.mxu0 0.0
  %142 = vmatpush1.msra.mxu0 0.0
  %143 = vmatprep.subr.mxu0 0.0
  %144 = vmatpush1.msra.mxu0 0.0
  %145 = vmatprep.subr.mxu0 0.0
  %146 = vmatpush1.msra.mxu0 0.0
  %147 = vmatprep.subr.mxu0 0.0
  %148 = vmatpush1.msra.mxu0 0.0
  %149 = vmatprep.subr.mxu0 0.0
  %150 = vmatpush1.msra.mxu0 0.0
  %151 = vmatprep.subr.mxu0 0.0
  %152 = vmatpush1.msra.mxu0 0.0
  %153 = vmatprep.subr.mxu0 0.0
  %154 = vmatpush1.msra.mxu0 0.0
  %155 = vmatprep.subr.mxu0 0.0
  %156 = vmatpush1.msra.mxu0 0.0
  %157 = vmatprep.subr.mxu0 0.0
  %158 = vmatpush1.msra.mxu0 0.0
  %159 = vmatprep.subr.mxu0 0.0
  %160 = vmatpush1.msra.mxu0 0.0
  %161 = vmatprep.subr.mxu0 0.0
  %162 = vmatpush1.msra.mxu0 0.0
  %163 = vmatprep.subr.mxu0 0.0
  %164 = vmatpush1.msra.mxu0 0.0
  %165 = vmatprep.subr.mxu0 0.0
  %166 = vmatpush1.msra.mxu0 0.0
  %167 = vmatprep.subr.mxu0 0.0
  %168 = vmatpush1.msra.mxu0 0.0
  %169 = vmatprep.subr.mxu0 0.0
  %170 = vmatpush1.msra.mxu0 0.0
  %171 = vmatprep.subr.mxu0 0.0
  %172 = vmatpush1.msra.mxu0 0.0
  %173 = vmatprep.subr.mxu0 0.0
  %174 = vmatpush1.msra.mxu0 0.0
  %175 = vmatprep.subr.mxu0 0.0
  %176 = vmatpush1.msra.mxu0 0.0
  %177 = vmatprep.subr.mxu0 0.0
  %178 = vmatpush1.msra.mxu0 0.0
  %179 = vmatprep.mubr.f32.mxu0 0.0
  %180 = vmatmul.mubr.f32.gmra.mrb[0].mxu0 %v68
  %v181 = vpop.f32.mrb[0].mxu0
  %v182 = vadd.f32 %v64, %v181
  %v183 = vpop.f32.mrb[0].mxu0
  %184 = vmatprep.mubr.f32.mxu0 0.0
  %185 = vmatmul.mubr.f32.gmra.mrb[0].mxu0 %v71
  %v186 = vpop.f32.mrb[0].mxu0
  %v187 = vadd.f32 %v64, %v186
  %v188 = vpop.f32.mrb[0].mxu0
  %189 = vmatprep.mubr.f32.mxu0 0.0
  %190 = vmatmul.mubr.f32.gmra.mrb[0].mxu0 %v74
  %v191 = vpop.f32.mrb[0].mxu0
  %v192 = vadd.f32 %v64, %v191
  %v193 = vpop.f32.mrb[0].mxu0
  %194 = vmatprep.mubr.f32.mxu0 0.0
  %195 = vmatmul.mubr.f32.gmra.mrb[0].mxu0 %v77
  %v196 = vpop.f32.mrb[0].mxu0
  %v197 = vadd.f32 %v64, %v196
  %v198 = vpop.f32.mrb[0].mxu0
  %199 = vmatprep.mubr.f32.mxu0 0.0
  %200 = vmatmul.mubr.f32.gmra.mrb[0].mxu0 %v80
  %v201 = vpop.f32.mrb[0].mxu0
  %v202 = vadd.f32 %v64, %v201
  %v203 = vpop.f32.mrb[0].mxu0
  %204 = vmatprep.mubr.f32.mxu0 0.0
  %205 = vmatmul.mubr.f32.gmra.mrb[0].mxu0 %v83
  %v206 = vpop.f32.mrb[0].mxu0
  %v207 = vadd.f32 %v64, %v206
  %v208 = vpop.f32.mrb[0].mxu0
  %209 = vmatprep.mubr.f32.mxu0 0.0
  %210 = vmatmul.mubr.f32.gmra.mrb[0].mxu0 %v86
  %v211 = vpop.f32.mrb[0].mxu0
  %v212 = vadd.f32 %v64, %v211
  %v213 = vpop.f32.mrb[0].mxu0
  %214 = vmatprep.mubr.f32.mxu0 0.0
  %215 = vmatmul.mubr.f32.gmra.mrb[0].mxu0 %v89
  %v216 = vpop.f32.mrb[0].mxu0
  %v217 = vadd.f32 %v64, %v216
  %v218 = vpop.f32.mrb[0].mxu0
  %219 = vmatprep.mubr.f32.mxu0 0.0
  %220 = vmatmul.mubr.f32.gmra.mrb[0].mxu0 %v92
  %v221 = vpop.f32.mrb[0].mxu0
  %v222 = vadd.f32 %v64, %v221
  %v223 = vpop.f32.mrb[0].mxu0
  %224 = vmatprep.mubr.f32.mxu0 0.0
  %225 = vmatmul.mubr.f32.gmra.mrb[0].mxu0 %v95
  %v226 = vpop.f32.mrb[0].mxu0
  %v227 = vadd.f32 %v64, %v226
  %v228 = vpop.f32.mrb[0].mxu0
  %229 = vmatprep.mubr.f32.mxu0 0.0
  %230 = vmatmul.mubr.f32.gmra.mrb[0].mxu0 %v98
  %v231 = vpop.f32.mrb[0].mxu0
  %v232 = vadd.f32 %v64, %v231
  %v233 = vpop.f32.mrb[0].mxu0
  %234 = vmatprep.mubr.f32.mxu0 0.0
  %235 = vmatmul.mubr.f32.gmra.mrb[0].mxu0 %v101
  %v236 = vpop.f32.mrb[0].mxu0
  %v237 = vadd.f32 %v64, %v236
  %v238 = vpop.f32.mrb[0].mxu0
  %239 = vmatprep.mubr.f32.mxu0 0.0
  %240 = vmatmul.mubr.f32.gmra.mrb[0].mxu0 %v104
  %v241 = vpop.f32.mrb[0].mxu0
  %v242 = vadd.f32 %v64, %v241
  %v243 = vpop.f32.mrb[0].mxu0
  %244 = vmatprep.mubr.f32.mxu0 0.0
  %245 = vmatmul.mubr.f32.gmra.mrb[0].mxu0 %v107
  %v246 = vpop.f32.mrb[0].mxu0
  %v247 = vadd.f32 %v64, %v246
  %v248 = vpop.f32.mrb[0].mxu0
  %249 = vmatprep.mubr.f32.mxu0 0.0
  %250 = vmatmul.mubr.f32.gmra.mrb[0].mxu0 %v110
  %v251 = vpop.f32.mrb[0].mxu0
  %v252 = vadd.f32 %v64, %v251
  %v253 = vpop.f32.mrb[0].mxu0
  %254 = vmatprep.mubr.f32.mxu0 0.0
  %255 = vmatmul.mubr.f32.gmra.mrb[0].mxu0 %v113
  %v256 = vpop.f32.mrb[0].mxu0
  %v257 = vadd.f32 %v64, %v256
  %v258 = vpop.f32.mrb[0].mxu0
  %259 = vdwg.mxu0
  %v260 = vmul.f32 %v182, 0.5
  %v261 = vmul.f32 %v187, 0.5
  %v262 = vmul.f32 %v192, 0.5
  %v263 = vmul.f32 %v197, 0.5
  %v264 = vmul.f32 %v202, 0.5
  %v265 = vmul.f32 %v207, 0.5
  %v266 = vmul.f32 %v212, 0.5
  %v267 = vmul.f32 %v217, 0.5
  %v268 = vmul.f32 %v222, 0.5
  %v269 = vmul.f32 %v227, 0.5
  %v270 = vmul.f32 %v232, 0.5
  %v271 = vmul.f32 %v237, 0.5
  %v272 = vmul.f32 %v242, 0.5
  %v273 = vmul.f32 %v247, 0.5
  %v274 = vmul.f32 %v252, 0.5
  %v275 = vmul.f32 %v257, 0.5
  %v276 = vmul.f32 %v182, 0.70710677
  %v277 = vmul.f32 %v187, 0.70710677
  %v278 = vmul.f32 %v192, 0.70710677
  %v279 = vmul.f32 %v197, 0.70710677
  %v280 = vmul.f32 %v202, 0.70710677
  %v281 = vmul.f32 %v207, 0.70710677
  %v282 = vmul.f32 %v212, 0.70710677
  %v283 = vmul.f32 %v217, 0.70710677
  %v284 = vmul.f32 %v222, 0.70710677
  %v285 = vmul.f32 %v227, 0.70710677
  %v286 = vmul.f32 %v232, 0.70710677
  %v287 = vmul.f32 %v237, 0.70710677
  %v288 = vmul.f32 %v242, 0.70710677
  %v289 = vmul.f32 %v247, 0.70710677
  %v290 = vmul.f32 %v252, 0.70710677
  %v291 = vmul.f32 %v257, 0.70710677
  %v292 = verf.f32.pop %v276
  %v293 = verf.f32.pop %v277
  %v294 = verf.f32.pop %v278
  %v295 = verf.f32.pop %v279
  %v296 = verf.f32.pop %v280
  %v297 = verf.f32.pop %v281
  %v298 = verf.f32.pop %v282
  %v299 = verf.f32.pop %v283
  %v300 = verf.f32.pop %v284
  %v301 = verf.f32.pop %v285
  %v302 = verf.f32.pop %v286
  %v303 = verf.f32.pop %v287
  %v304 = verf.f32.pop %v288
  %v305 = verf.f32.pop %v289
  %v306 = verf.f32.pop %v290
  %v307 = verf.f32.pop %v291
  %v308 = vadd.f32 %v292, 1.0
  %v309 = vadd.f32 %v293, 1.0
  %v310 = vadd.f32 %v294, 1.0
  %v311 = vadd.f32 %v295, 1.0
  %v312 = vadd.f32 %v296, 1.0
  %v313 = vadd.f32 %v297, 1.0
  %v314 = vadd.f32 %v298, 1.0
  %v315 = vadd.f32 %v299, 1.0
  %v316 = vadd.f32 %v300, 1.0
  %v317 = vadd.f32 %v301, 1.0
  %v318 = vadd.f32 %v302, 1.0
  %v319 = vadd.f32 %v303, 1.0
  %v320 = vadd.f32 %v304, 1.0
  %v321 = vadd.f32 %v305, 1.0
  %v322 = vadd.f32 %v306, 1.0
  %v323 = vadd.f32 %v307, 1.0
  %v324 = vmul.f32 %v260, %v308
  %v325 = vmul.f32 %v261, %v309
  %v326 = vmul.f32 %v262, %v310
  %v327 = vmul.f32 %v263, %v311
  %v328 = vmul.f32 %v264, %v312
  %v329 = vmul.f32 %v265, %v313
  %v330 = vmul.f32 %v266, %v314
  %v331 = vmul.f32 %v267, %v315
  %v332 = vmul.f32 %v268, %v316
  %v333 = vmul.f32 %v269, %v317
  %v334 = vmul.f32 %v270, %v318
  %v335 = vmul.f32 %v271, %v319
  %v336 = vmul.f32 %v272, %v320
  %v337 = vmul.f32 %v273, %v321
  %v338 = vmul.f32 %v274, %v322
  %v339 = vmul.f32 %v275, %v323
  %v340 = vld [vmem:[#allocation2] sm:$0xff]
  %v341 = vld [vmem:[#allocation2 + $0x8] sm:$0xff]
  %v342 = vld [vmem:[#allocation2 + $0x10] sm:$0xff]
  %v343 = vld [vmem:[#allocation2 + $0x18] sm:$0xff]
  %v344 = vld [vmem:[#allocation2 + $0x20] sm:$0xff]
  %v345 = vld [vmem:[#allocation2 + $0x28] sm:$0xff]
  %v346 = vld [vmem:[#allocation2 + $0x30] sm:$0xff]
  %v347 = vld [vmem:[#allocation2 + $0x38] sm:$0xff]
  %v348 = vld [vmem:[#allocation2 + $0x40] sm:$0xff]
  %v349 = vld [vmem:[#allocation2 + $0x48] sm:$0xff]
  %v350 = vld [vmem:[#allocation2 + $0x50] sm:$0xff]
  %v351 = vld [vmem:[#allocation2 + $0x58] sm:$0xff]
  %v352 = vld [vmem:[#allocation2 + $0x60] sm:$0xff]
  %v353 = vld [vmem:[#allocation2 + $0x68] sm:$0xff]
  %v354 = vld [vmem:[#allocation2 + $0x70] sm:$0xff]
  %v355 = vld [vmem:[#allocation2 + $0x78] sm:$0xff]
  %v356 = vld [vmem:[%s3] sm:$0xff]
  %v357 = vld [vmem:[%s3 + $0x8] sm:$0xff]
  %v358 = vld [vmem:[%s3 + $0x10] sm:$0xff]
  %v359 = vld [vmem:[%s3 + $0x18] sm:$0xff]
  %vm360 = vcmask 261120
  %v362 = vsel %vm360, %v324, 0
  %v365 = vsel %vm360, %v325, 0
  %v368 = vsel %vm360, %v326, 0
  %v371 = vsel %vm360, %v327, 0
  %v374 = vsel %vm360, %v328, 0
  %v377 = vsel %vm360, %v329, 0
  %v380 = vsel %vm360, %v330, 0
  %v383 = vsel %vm360, %v331, 0
  %v386 = vsel %vm360, %v332, 0
  %v389 = vsel %vm360, %v333, 0
  %v392 = vsel %vm360, %v334, 0
  %v395 = vsel %vm360, %v335, 0
  %v398 = vsel %vm360, %v336, 0
  %v401 = vsel %vm360, %v337, 0
  %v404 = vsel %vm360, %v338, 0
  %v407 = vsel %vm360, %v339, 0
  %409 = vmatprep.subr.mxu0 0.0
  %410 = vmatpush1.msra.mxu0 %v356
  %411 = vmatprep.subr.mxu0 0.0
  %412 = vmatpush1.msra.mxu0 %v357
  %413 = vmatprep.subr.mxu0 0.0
  %414 = vmatpush1.msra.mxu0 %v358
  %415 = vmatprep.subr.mxu0 0.0
  %416 = vmatpush1.msra.mxu0 %v359
  %417 = vmatprep.subr.mxu0 0.0
  %418 = vmatpush1.msra.mxu0 0.0
  %419 = vmatprep.subr.mxu0 0.0
  %420 = vmatpush1.msra.mxu0 0.0
  %421 = vmatprep.subr.mxu0 0.0
  %422 = vmatpush1.msra.mxu0 0.0
  %423 = vmatprep.subr.mxu0 0.0
  %424 = vmatpush1.msra.mxu0 0.0
  %425 = vmatprep.subr.mxu0 0.0
  %426 = vmatpush1.msra.mxu0 0.0
  %427 = vmatprep.subr.mxu0 0.0
  %428 = vmatpush1.msra.mxu0 0.0
  %429 = vmatprep.subr.mxu0 0.0
  %430 = vmatpush1.msra.mxu0 0.0
  %431 = vmatprep.subr.mxu0 0.0
  %432 = vmatpush1.msra.mxu0 0.0
  %433 = vmatprep.subr.mxu0 0.0
  %434 = vmatpush1.msra.mxu0 0.0
  %435 = vmatprep.subr.mxu0 0.0
  %436 = vmatpush1.msra.mxu0 0.0
  %437 = vmatprep.subr.mxu0 0.0
  %438 = vmatpush1.msra.mxu0 0.0
  %439 = vmatprep.subr.mxu0 0.0
  %440 = vmatpush1.msra.mxu0 0.0
  %441 = vmatprep.subr.mxu0 0.0
  %442 = vmatpush1.msra.mxu0 0.0
  %443 = vmatprep.subr.mxu0 0.0
  %444 = vmatpush1.msra.mxu0 0.0
  %445 = vmatprep.subr.mxu0 0.0
  %446 = vmatpush1.msra.mxu0 0.0
  %447 = vmatprep.subr.mxu0 0.0
  %448 = vmatpush1.msra.mxu0 0.0
  %449 = vmatprep.subr.mxu0 0.0
  %450 = vmatpush1.msra.mxu0 0.0
  %451 = vmatprep.subr.mxu0 0.0
  %452 = vmatpush1.msra.mxu0 0.0
  %453 = vmatprep.subr.mxu0 0.0
  %454 = vmatpush1.msra.mxu0 0.0
  %455 = vmatprep.subr.mxu0 0.0
  %456 = vmatpush1.msra.mxu0 0.0
  %457 = vmatprep.subr.mxu0 0.0
  %458 = vmatpush1.msra.mxu0 0.0
  %459 = vmatprep.subr.mxu0 0.0
  %460 = vmatpush1.msra.mxu0 0.0
  %461 = vmatprep.subr.mxu0 0.0
  %462 = vmatpush1.msra.mxu0 0.0
  %463 = vmatprep.subr.mxu0 0.0
  %464 = vmatpush1.msra.mxu0 0.0
  %465 = vmatprep.subr.mxu0 0.0
  %466 = vmatpush1.msra.mxu0 0.0
  %467 = vmatprep.subr.mxu0 0.0
  %468 = vmatpush1.msra.mxu0 0.0
  %469 = vmatprep.subr.mxu0 0.0
  %470 = vmatpush1.msra.mxu0 0.0
  %471 = vmatprep.subr.mxu0 0.0
  %472 = vmatpush1.msra.mxu0 0.0
  %473 = vmatprep.mubr.f32.mxu0 0.0
  %474 = vmatmul.mubr.f32.gmra.mrb[0].mxu0 %v362
  %v475 = vpop.f32.mrb[0].mxu0
  %v476 = vadd.f32 0.0, %v475
  %v477 = vpop.f32.mrb[0].mxu0
  %478 = vmatprep.mubr.f32.mxu0 0.0
  %479 = vmatmul.mubr.f32.gmra.mrb[0].mxu0 %v365
  %v480 = vpop.f32.mrb[0].mxu0
  %v481 = vadd.f32 0.0, %v480
  %v482 = vpop.f32.mrb[0].mxu0
  %483 = vmatprep.mubr.f32.mxu0 0.0
  %484 = vmatmul.mubr.f32.gmra.mrb[0].mxu0 %v368
  %v485 = vpop.f32.mrb[0].mxu0
  %v486 = vadd.f32 0.0, %v485
  %v487 = vpop.f32.mrb[0].mxu0
  %488 = vmatprep.mubr.f32.mxu0 0.0
  %489 = vmatmul.mubr.f32.gmra.mrb[0].mxu0 %v371
  %v490 = vpop.f32.mrb[0].mxu0
  %v491 = vadd.f32 0.0, %v490
  %v492 = vpop.f32.mrb[0].mxu0
  %493 = vmatprep.mubr.f32.mxu0 0.0
  %494 = vmatmul.mubr.f32.gmra.mrb[0].mxu0 %v374
  %v495 = vpop.f32.mrb[0].mxu0
  %v496 = vadd.f32 0.0, %v495
  %v497 = vpop.f32.mrb[0].mxu0
  %498 = vmatprep.mubr.f32.mxu0 0.0
  %499 = vmatmul.mubr.f32.gmra.mrb[0].mxu0 %v377
  %v500 = vpop.f32.mrb[0].mxu0
  %v501 = vadd.f32 0.0, %v500
  %v502 = vpop.f32.mrb[0].mxu0
  %503 = vmatprep.mubr.f32.mxu0 0.0
  %504 = vmatmul.mubr.f32.gmra.mrb[0].mxu0 %v380
  %v505 = vpop.f32.mrb[0].mxu0
  %v506 = vadd.f32 0.0, %v505
  %v507 = vpop.f32.mrb[0].mxu0
  %508 = vmatprep.mubr.f32.mxu0 0.0
  %509 = vmatmul.mubr.f32.gmra.mrb[0].mxu0 %v383
  %v510 = vpop.f32.mrb[0].mxu0
  %v511 = vadd.f32 0.0, %v510
  %v512 = vpop.f32.mrb[0].mxu0
  %513 = vmatprep.mubr.f32.mxu0 0.0
  %514 = vmatmul.mubr.f32.gmra.mrb[0].mxu0 %v386
  %v515 = vpop.f32.mrb[0].mxu0
  %v516 = vadd.f32 0.0, %v515
  %v517 = vpop.f32.mrb[0].mxu0
  %518 = vmatprep.mubr.f32.mxu0 0.0
  %519 = vmatmul.mubr.f32.gmra.mrb[0].mxu0 %v389
  %v520 = vpop.f32.mrb[0].mxu0
  %v521 = vadd.f32 0.0, %v520
  %v522 = vpop.f32.mrb[0].mxu0
  %523 = vmatprep.mubr.f32.mxu0 0.0
  %524 = vmatmul.mubr.f32.gmra.mrb[0].mxu0 %v392
  %v525 = vpop.f32.mrb[0].mxu0
  %v526 = vadd.f32 0.0, %v525
  %v527 = vpop.f32.mrb[0].mxu0
  %528 = vmatprep.mubr.f32.mxu0 0.0
  %529 = vmatmul.mubr.f32.gmra.mrb[0].mxu0 %v395
  %v530 = vpop.f32.mrb[0].mxu0
  %v531 = vadd.f32 0.0, %v530
  %v532 = vpop.f32.mrb[0].mxu0
  %533 = vmatprep.mubr.f32.mxu0 0.0
  %534 = vmatmul.mubr.f32.gmra.mrb[0].mxu0 %v398
  %v535 = vpop.f32.mrb[0].mxu0
  %v536 = vadd.f32 0.0, %v535
  %v537 = vpop.f32.mrb[0].mxu0
  %538 = vmatprep.mubr.f32.mxu0 0.0
  %539 = vmatmul.mubr.f32.gmra.mrb[0].mxu0 %v401
  %v540 = vpop.f32.mrb[0].mxu0
  %v541 = vadd.f32 0.0, %v540
  %v542 = vpop.f32.mrb[0].mxu0
  %543 = vmatprep.mubr.f32.mxu0 0.0
  %544 = vmatmul.mubr.f32.gmra.mrb[0].mxu0 %v404
  %v545 = vpop.f32.mrb[0].mxu0
  %v546 = vadd.f32 0.0, %v545
  %v547 = vpop.f32.mrb[0].mxu0
  %548 = vmatprep.mubr.f32.mxu0 0.0
  %549 = vmatmul.mubr.f32.gmra.mrb[0].mxu0 %v407
  %v550 = vpop.f32.mrb[0].mxu0
  %v551 = vadd.f32 0.0, %v550
  %v552 = vpop.f32.mrb[0].mxu0
  %553 = vdwg.mxu0
  %v554 = vadd.f32 %v340, %v476
  %v555 = vadd.f32 %v341, %v481
  %v556 = vadd.f32 %v342, %v486
  %v557 = vadd.f32 %v343, %v491
  %v558 = vadd.f32 %v344, %v496
  %v559 = vadd.f32 %v345, %v501
  %v560 = vadd.f32 %v346, %v506
  %v561 = vadd.f32 %v347, %v511
  %v562 = vadd.f32 %v348, %v516
  %v563 = vadd.f32 %v349, %v521
  %v564 = vadd.f32 %v350, %v526
  %v565 = vadd.f32 %v351, %v531
  %v566 = vadd.f32 %v352, %v536
  %v567 = vadd.f32 %v353, %v541
  %v568 = vadd.f32 %v354, %v546
  %v569 = vadd.f32 %v355, %v551
  %570 = vst.msk [vmem:[#allocation2] sm:$0xff] %vm66, %v554
  %571 = vst.msk [vmem:[#allocation2 + $0x8] sm:$0xff] %vm66, %v555
  %572 = vst.msk [vmem:[#allocation2 + $0x10] sm:$0xff] %vm66, %v556
  %573 = vst.msk [vmem:[#allocation2 + $0x18] sm:$0xff] %vm66, %v557
  %574 = vst.msk [vmem:[#allocation2 + $0x20] sm:$0xff] %vm66, %v558
  %575 = vst.msk [vmem:[#allocation2 + $0x28] sm:$0xff] %vm66, %v559
  %576 = vst.msk [vmem:[#allocation2 + $0x30] sm:$0xff] %vm66, %v560
  %577 = vst.msk [vmem:[#allocation2 + $0x38] sm:$0xff] %vm66, %v561
  %578 = vst.msk [vmem:[#allocation2 + $0x40] sm:$0xff] %vm66, %v562
  %579 = vst.msk [vmem:[#allocation2 + $0x48] sm:$0xff] %vm66, %v563
  %580 = vst.msk [vmem:[#allocation2 + $0x50] sm:$0xff] %vm66, %v564
  %581 = vst.msk [vmem:[#allocation2 + $0x58] sm:$0xff] %vm66, %v565
  %582 = vst.msk [vmem:[#allocation2 + $0x60] sm:$0xff] %vm66, %v566
  %583 = vst.msk [vmem:[#allocation2 + $0x68] sm:$0xff] %vm66, %v567
  %584 = vst.msk [vmem:[#allocation2 + $0x70] sm:$0xff] %vm66, %v568
  %585 = vst.msk [vmem:[#allocation2 + $0x78] sm:$0xff] %vm66, %v569
  // Predicated region
  $region26: #{tpu_custom_call.1} parent=0 // pred_check
    %p586 = pneg %p20
  $region27: #{tpu_custom_call.1} parent=0 // pred_check_branch
    %588 = sbr.rel (%p586) target = $region29
  $region28: #{tpu_custom_call.1} parent=0 // pred_region
    %v589 = vld [vmem:[#allocation2] sm:$0xff]
    %v590 = vld [vmem:[#allocation2 + $0x8] sm:$0xff]
    %v591 = vld [vmem:[#allocation2 + $0x10] sm:$0xff]
    %v592 = vld [vmem:[#allocation2 + $0x18] sm:$0xff]
    %v593 = vld [vmem:[#allocation2 + $0x20] sm:$0xff]
    %v594 = vld [vmem:[#allocation2 + $0x28] sm:$0xff]
    %v595 = vld [vmem:[#allocation2 + $0x30] sm:$0xff]
    %v596 = vld [vmem:[#allocation2 + $0x38] sm:$0xff]
    %v597 = vld [vmem:[#allocation2 + $0x40] sm:$0xff]
    %v598 = vld [vmem:[#allocation2 + $0x48] sm:$0xff]
    %v599 = vld [vmem:[#allocation2 + $0x50] sm:$0xff]
    %v600 = vld [vmem:[#allocation2 + $0x58] sm:$0xff]
    %v601 = vld [vmem:[#allocation2 + $0x60] sm:$0xff]
    %v602 = vld [vmem:[#allocation2 + $0x68] sm:$0xff]
    %v603 = vld [vmem:[#allocation2 + $0x70] sm:$0xff]
    %v604 = vld [vmem:[#allocation2 + $0x78] sm:$0xff]
    %v605 = vld [vmem:[%s4] sm:$0x1]
    %v607 = vlaneseq
    %v608 = vshrl.u32 %v607, 7
    %v609 = vsub.s32 0, %v608
    %v610 = vrot.slane %v605, %v609
    %v612 = vadd.f32 %v589, %v610
    %v613 = vadd.f32 %v590, %v610
    %v614 = vadd.f32 %v591, %v610
    %v615 = vadd.f32 %v592, %v610
    %v616 = vadd.f32 %v593, %v610
    %v617 = vadd.f32 %v594, %v610
    %v618 = vadd.f32 %v595, %v610
    %v619 = vadd.f32 %v596, %v610
    %v620 = vadd.f32 %v597, %v610
    %v621 = vadd.f32 %v598, %v610
    %v622 = vadd.f32 %v599, %v610
    %v623 = vadd.f32 %v600, %v610
    %v624 = vadd.f32 %v601, %v610
    %v625 = vadd.f32 %v602, %v610
    %v626 = vadd.f32 %v603, %v610
    %v627 = vadd.f32 %v604, %v610
    %628 = vst.msk [vmem:[%s5] sm:$0xff] %vm66, %v612
    %629 = vst.msk [vmem:[%s5 + $0x8] sm:$0xff] %vm66, %v613
    %630 = vst.msk [vmem:[%s5 + $0x10] sm:$0xff] %vm66, %v614
    %631 = vst.msk [vmem:[%s5 + $0x18] sm:$0xff] %vm66, %v615
    %632 = vst.msk [vmem:[%s5 + $0x20] sm:$0xff] %vm66, %v616
    %633 = vst.msk [vmem:[%s5 + $0x28] sm:$0xff] %vm66, %v617
    %634 = vst.msk [vmem:[%s5 + $0x30] sm:$0xff] %vm66, %v618
    %635 = vst.msk [vmem:[%s5 + $0x38] sm:$0xff] %vm66, %v619
    %636 = vst.msk [vmem:[%s5 + $0x40] sm:$0xff] %vm66, %v620
    %637 = vst.msk [vmem:[%s5 + $0x48] sm:$0xff] %vm66, %v621
    %638 = vst.msk [vmem:[%s5 + $0x50] sm:$0xff] %vm66, %v622
    %639 = vst.msk [vmem:[%s5 + $0x58] sm:$0xff] %vm66, %v623
    %640 = vst.msk [vmem:[%s5 + $0x60] sm:$0xff] %vm66, %v624
    %641 = vst.msk [vmem:[%s5 + $0x68] sm:$0xff] %vm66, %v625
    %642 = vst.msk [vmem:[%s5 + $0x70] sm:$0xff] %vm66, %v626
    %643 = vst.msk [vmem:[%s5 + $0x78] sm:$0xff] %vm66, %v627
  $region29: #{tpu_custom_call.1} parent=0 // pred_fallthru
    _
  // Predicated region
  $region30: #{tpu_custom_call.1} parent=0 // pred_check
    _
  $region31: #{tpu_custom_call.1} parent=0 // pred_check_branch
    %645 = sbr.rel (0) target = $region33
  $region32: #{tpu_custom_call.1} parent=0 // pred_region
    _
  $region33: #{tpu_custom_call.1} parent=0 // pred_fallthru
    _
  // Predicated region
  $region34: #{tpu_custom_call.1} parent=0 // pred_check
    _
  $region35: #{tpu_custom_call.1} parent=0 // pred_check_branch
    %647 = sbr.rel (0) target = $region37
  $region36: #{tpu_custom_call.1} parent=0 // pred_region
    _
  $region37: #{tpu_custom_call.1} parent=0 // pred_fallthru
    _

</llo_original>
